<compile_context>
chip_gen: v5e
topology: v5e:2x2
jax: 0.10.0
libtpu: 0.0.40
codegen_flags: <defaults>
</compile_context>

<pallas_src>
import functools

import jax
import jax.numpy as jnp
from jax.experimental import pallas as pl
from jax.experimental.pallas import tpu as pltpu

L = 12          # number of layers (12 Linear pairs in the module)
D_IN = 768      # Linear1 in_features
D_MID = 256     # Linear1 out_features / Linear2 in_features
D_OUT = 512     # Linear2 out_features
EPS = 2.3e-08   # from AdaIN.sigma


def _style_projector_kernel(x_ref, w_ref, b_ref, o_ref, *, n_true, n_chunk):
    # x_ref: (1, TB, N_pad, 768)  one layer, one batch tile (zero-padded N/B ok)
    # w_ref: (1, 768, 512)        fused per-layer weight  W1 @ W2
    # b_ref: (1, 1, 512)          fused per-layer bias    b1 @ W2 + b2
    # o_ref: (1, TB, 512)
    tb = x_ref.shape[1]
    num_chunks = x_ref.shape[2] // n_chunk          # static python int

    def body(c, carry):
        s, ss = carry
        start = pl.multiple_of(c * n_chunk, n_chunk)
        chunk = x_ref[0, :, pl.ds(start, n_chunk), :].astype(jnp.float32)
        s = s + jnp.sum(chunk, axis=1)              # (TB, 768)
        ss = ss + jnp.sum(chunk * chunk, axis=1)    # (TB, 768)
        return s, ss

    zero = jnp.zeros((tb, D_IN), jnp.float32)
    s, ss = jax.lax.fori_loop(0, num_chunks, body, (zero, zero),
                              unroll=(num_chunks <= 8))

    # Single-pass mean / std.  Zero padding of N/B contributes nothing to the
    # sums; divide by the *true* N.  sum((x-mu)^2) = sum(x^2) - sum(x)*mu.
    inv_n = jnp.float32(1.0 / n_true)
    mu = s * inv_n                                          # (TB, 768)
    css = jnp.maximum(ss - s * mu, 0.0)                     # guard tiny negatives
    sigma = jnp.sqrt((css + EPS) * inv_n)                   # (TB, 768)
    feat = 0.5 * (mu + sigma)                               # cat + avg-pool

    out = jnp.dot(feat, w_ref[0], preferred_element_type=jnp.float32)
    out = out + b_ref[0, 0]                                 # (TB, 512)
    o_ref[0] = out.astype(o_ref.dtype)


def _pick_n_chunk(n):
    """Return (padded_N, chunk).  Zero-padding N is exact for sum / sum-sq."""
    if n <= 64:
        return n, n                       # single chunk, no inner loop work
    n_pad = -(-n // 8) * 8                # sublane-align; minimal extra DMA
    for c in (128, 64, 32, 16, 8):
        if n_pad % c == 0:
            return n_pad, c
    return n_pad, 8                       # unreachable (n_pad is a multiple of 8)


def _pick_batch_tile(b, n_pad, itemsize):
    """Batch tile so one data buffer stays <= ~6 MiB (double-buffered), and the
    tile is either the full batch or a multiple of 8 (sublane rule)."""
    per_row = n_pad * D_IN * itemsize
    budget = 6 << 20
    tb = max(1, budget // per_row)
    if tb >= b:
        return int(b)
    return int(max(8, min(256, (tb // 8) * 8)))


def style_projector_forward(data, w1, b1, w2, b2):
    """data: [L, B, N, 768]; returns [B, L, 512] (matches torch.stack(dim=1))."""
    l, b, n, d = data.shape
    assert l == L and d == D_IN

    # Fold linear1 -> linear2 (exact; no nonlinearity between them).
    # In production this would be precomputed once at init.
    w1f = w1.astype(jnp.float32)
    w2f = w2.astype(jnp.float32)
    w_eff = jnp.einsum("ldm,lmo->ldo", w1f, w2f)                      # (L,768,512)
    b_eff = (jnp.einsum("lm,lmo->lo", b1.astype(jnp.float32), w2f)
             + b2.astype(jnp.float32)).reshape(L, 1, D_OUT)           # (L,1,512)

    itemsize = jnp.dtype(data.dtype).itemsize
    n_pad, n_chunk = _pick_n_chunk(n)
    tb = _pick_batch_tile(b, n_pad, itemsize)
    b_pad = -(-b // tb) * tb
    if n_pad != n or b_pad != b:
        # Zero padding is exact for the sum / sum-of-squares accumulation;
        # padded batch rows are sliced off below.
        data = jnp.pad(data, ((0, 0), (0, b_pad - b), (0, n_pad - n), (0, 0)))
    nb = b_pad // tb

    # VMEM budget: double-buffered data block + weight block + output block.
    data_block = tb * n_pad * D_IN * itemsize
    vmem_limit = 2 * (data_block + D_IN * D_OUT * 4 + tb * D_OUT * 4) + (8 << 20)
    vmem_limit = int(min(max(vmem_limit, 32 << 20), 64 << 20))   # v7x-safe cap

    kernel = functools.partial(_style_projector_kernel,
                               n_true=n, n_chunk=n_chunk)

    out = pl.pallas_call(
        kernel,
        out_shape=jax.ShapeDtypeStruct((L, b_pad, D_OUT), jnp.float32),
        grid_spec=pltpu.PrefetchScalarGridSpec(
            num_scalar_prefetch=0,
            grid=(L, nb),
            in_specs=[
                pl.BlockSpec((1, tb, n_pad, D_IN), lambda i, j: (i, j, 0, 0)),
                pl.BlockSpec((1, D_IN, D_OUT), lambda i, j: (i, 0, 0)),
                pl.BlockSpec((1, 1, D_OUT), lambda i, j: (i, 0, 0)),
            ],
            out_specs=pl.BlockSpec((1, tb, D_OUT), lambda i, j: (i, j, 0)),
        ),
        compiler_params=pltpu.CompilerParams(
            dimension_semantics=("parallel", "parallel"),
            vmem_limit_bytes=vmem_limit,
        ),
    )(data, w_eff, b_eff)

    out = jnp.transpose(out, (1, 0, 2))          # (B_pad, L, 512) — tiny
    return out[:b] if b_pad != b else out


def _reference_forward(data, w1, b1, w2, b2):
    """Pure-JAX reference mirroring the PyTorch forward (two-pass, unfused)."""
    x = data.astype(jnp.float32)
    n = x.shape[2]
    mu = jnp.sum(x, axis=2) / n                                   # (L, B, 768)
    sigma = jnp.sqrt((jnp.sum((x - mu[:, :, None, :]) ** 2, axis=2) + EPS) / n)
    feat = 0.5 * (mu + sigma)                                     # (L, B, 768)
    h = jnp.einsum("lbd,ldm->lbm", feat, w1) + b1[:, None, :]
    out = jnp.einsum("lbm,lmo->lbo", h, w2) + b2[:, None, :]
    return jnp.transpose(out, (1, 0, 2))                          # (B, L, 512)


if __name__ == "__main__":
    key = jax.random.PRNGKey(0)
    k_data, k_w1, k_b1, k_w2, k_b2 = jax.random.split(key, 5)

    B, N = 2, 8   # small batch / sequence; feature dims fixed by the module

    data = jax.random.normal(k_data, (L, B, N, D_IN), dtype=jnp.float32)

    # Deterministic synthetic parameters (shapes from nn.Linear(768,256)/(256,512)).
    # Stored already transposed so the kernel does x @ W (PyTorch does x @ W.T).
    w1 = jax.random.normal(k_w1, (L, D_IN, D_MID), dtype=jnp.float32) * 0.02
    b1 = jax.random.normal(k_b1, (L, D_MID), dtype=jnp.float32) * 0.02
    w2 = jax.random.normal(k_w2, (L, D_MID, D_OUT), dtype=jnp.float32) * 0.02
    b2 = jax.random.normal(k_b2, (L, D_OUT), dtype=jnp.float32) * 0.02

    out = style_projector_forward(data, w1, b1, w2, b2)
    out = jax.block_until_ready(out)

    ref = jax.block_until_ready(_reference_forward(data, w1, b1, w2, b2))
    assert out.shape == (B, L, D_OUT), out.shape
    assert jnp.allclose(out, ref, atol=1e-4, rtol=1e-4), \
        float(jnp.max(jnp.abs(out - ref)))

    print("KERNEL_OK")
</pallas_src>

<mosaic_0001>
module attributes {stable_mosaic.version = 11 : i64} {
  func.func @_style_projector_kernel(%arg0: i32, %arg1: i32, %arg2: memref<1x2x8x768xf32, #tpu.memory_space<vmem>>, %arg3: memref<1x768x512xf32, #tpu.memory_space<vmem>>, %arg4: memref<1x1x512xf32, #tpu.memory_space<vmem>>, %arg5: memref<1x2x512xf32, #tpu.memory_space<vmem>>) attributes {dimension_semantics = [#tpu.dimension_semantics<parallel>, #tpu.dimension_semantics<parallel>], iteration_bounds = array<i64: 12, 1>, scalar_prefetch = 0 : i64, scratch_operands = 0 : i64, tpu.core_type = #tpu.core_type<tc>, window_params = [{transform_indices = @transform_0, window_bounds = array<i64: 1, 2, 8, 768>}, {transform_indices = @transform_1, window_bounds = array<i64: 1, 768, 512>}, {transform_indices = @transform_2, window_bounds = array<i64: 1, 1, 512>}, {transform_indices = @transform_3, window_bounds = array<i64: 1, 2, 512>}]} {
    %cst = arith.constant 0.000000e+00 : f32
    %0 = vector.broadcast %cst : f32 to vector<2x768xf32>
    %c0_i32 = arith.constant 0 : i32
    %c8_i32 = arith.constant 8 : i32
    %1 = arith.muli %c0_i32, %c8_i32 : i32
    %2 = tpu.assume_multiple %1, 8 : i32
    %c0 = arith.constant 0 : index
    %c0_0 = arith.constant 0 : index
    %3 = arith.index_cast %2 : i32 to index
    %c0_1 = arith.constant 0 : index
    %4 = vector.load %arg2[%c0, %c0_0, %3, %c0_1] : memref<1x2x8x768xf32, #tpu.memory_space<vmem>>, vector<1x2x8x768xf32>
    %5 = vector.shape_cast %4 : vector<1x2x8x768xf32> to vector<2x8x768xf32>
    %cst_2 = arith.constant dense<0.000000e+00> : vector<2x768xf32>
    %6 = vector.multi_reduction <add>, %5, %cst_2 [1] : vector<2x8x768xf32> to vector<2x768xf32>
    %7 = arith.addf %0, %6 : vector<2x768xf32>
    %8 = arith.mulf %5, %5 : vector<2x8x768xf32>
    %cst_3 = arith.constant dense<0.000000e+00> : vector<2x768xf32>
    %9 = vector.multi_reduction <add>, %8, %cst_3 [1] : vector<2x8x768xf32> to vector<2x768xf32>
    %10 = arith.addf %0, %9 : vector<2x768xf32>
    %c1_i32 = arith.constant 1 : i32
    %cst_4 = arith.constant 1.250000e-01 : f32
    %11 = vector.broadcast %cst_4 : f32 to vector<2x768xf32>
    %12 = arith.mulf %7, %11 : vector<2x768xf32>
    %13 = arith.mulf %7, %12 : vector<2x768xf32>
    %14 = arith.subf %10, %13 : vector<2x768xf32>
    %cst_5 = arith.constant 0.000000e+00 : f32
    %15 = vector.broadcast %cst_5 : f32 to vector<2x768xf32>
    %16 = arith.maximumf %14, %15 : vector<2x768xf32>
    %cst_6 = arith.constant 2.300000e-08 : f32
    %17 = vector.broadcast %cst_6 : f32 to vector<2x768xf32>
    %18 = arith.addf %16, %17 : vector<2x768xf32>
    %cst_7 = arith.constant 1.250000e-01 : f32
    %19 = vector.broadcast %cst_7 : f32 to vector<2x768xf32>
    %20 = arith.mulf %18, %19 : vector<2x768xf32>
    %21 = math.sqrt %20 : vector<2x768xf32>
    %22 = arith.addf %12, %21 : vector<2x768xf32>
    %cst_8 = arith.constant 5.000000e-01 : f32
    %23 = vector.broadcast %cst_8 : f32 to vector<2x768xf32>
    %24 = arith.mulf %23, %22 : vector<2x768xf32>
    %c0_9 = arith.constant 0 : index
    %c0_10 = arith.constant 0 : index
    %c0_11 = arith.constant 0 : index
    %25 = vector.load %arg3[%c0_9, %c0_10, %c0_11] : memref<1x768x512xf32, #tpu.memory_space<vmem>>, vector<1x768x512xf32>
    %26 = vector.shape_cast %25 : vector<1x768x512xf32> to vector<768x512xf32>
    %cst_12 = arith.constant dense<0.000000e+00> : vector<2x512xf32>
    %27 = tpu.matmul %24, %26, %cst_12 {dimension_numbers = #tpu.dot_dimension_numbers<[1], [0], [0], [1], [0, 0, 1, 1], [], []>} : vector<2x768xf32>, vector<768x512xf32>, vector<2x512xf32> -> vector<2x512xf32>
    %c0_13 = arith.constant 0 : index
    %c0_14 = arith.constant 0 : index
    %c0_15 = arith.constant 0 : index
    %28 = vector.load %arg4[%c0_13, %c0_14, %c0_15] : memref<1x1x512xf32, #tpu.memory_space<vmem>>, vector<1x1x512xf32>
    %29 = vector.shape_cast %28 : vector<1x1x512xf32> to vector<512xf32>
    %30 = vector.shape_cast %29 : vector<512xf32> to vector<1x512xf32>
    %31 = vector.broadcast %30 : vector<1x512xf32> to vector<2x512xf32>
    %32 = arith.addf %27, %31 : vector<2x512xf32>
    %c0_16 = arith.constant 0 : index
    %c0_17 = arith.constant 0 : index
    %c0_18 = arith.constant 0 : index
    %33 = vector.load %arg5[%c0_16, %c0_17, %c0_18] : memref<1x2x512xf32, #tpu.memory_space<vmem>>, vector<1x2x512xf32>
    %34 = vector.shape_cast %33 : vector<1x2x512xf32> to vector<2x512xf32>
    %35 = vector.shape_cast %32 : vector<2x512xf32> to vector<1x2x512xf32>
    tpu.vector_store %arg5[%c0_16, %c0_17, %c0_18], %35 {strides = array<i32>} : memref<1x2x512xf32, #tpu.memory_space<vmem>>, vector<1x2x512xf32>,
    return
  }
  func.func @transform_0(%arg0: i32, %arg1: i32) -> (i32, i32, i32, i32) {
    %c0_i32 = arith.constant 0 : i32
    %c0_i32_0 = arith.constant 0 : i32
    %c0_i32_1 = arith.constant 0 : i32
    return %arg0, %arg1, %c0_i32, %c0_i32_0 : i32, i32, i32, i32
  }
  func.func @transform_1(%arg0: i32, %arg1: i32) -> (i32, i32, i32) {
    %c0_i32 = arith.constant 0 : i32
    %c0_i32_0 = arith.constant 0 : i32
    %c0_i32_1 = arith.constant 0 : i32
    return %arg0, %c0_i32, %c0_i32_0 : i32, i32, i32
  }
  func.func @transform_2(%arg0: i32, %arg1: i32) -> (i32, i32, i32) {
    %c0_i32 = arith.constant 0 : i32
    %c0_i32_0 = arith.constant 0 : i32
    %c0_i32_1 = arith.constant 0 : i32
    return %arg0, %c0_i32, %c0_i32_0 : i32, i32, i32
  }
  func.func @transform_3(%arg0: i32, %arg1: i32) -> (i32, i32, i32) {
    %c0_i32 = arith.constant 0 : i32
    %c0_i32_0 = arith.constant 0 : i32
    return %arg0, %arg1, %c0_i32 : i32, i32, i32
  }
}

</mosaic_0001>

<llo_original>
// kernel: tpu_custom_call.1
$region0: #{tpu_custom_call.1}
  #allocation0 [shape = 'u32[]', space=smem, size = 0x4, offset = 0x4, fixed_abs, tag = 'smem constant byte address 0x4 - core index']
  #allocation1 [shape = 'u32[72,128]{1,0:T(1,128)}', space=vmem, size = 0x9000, scoped, tag = 'internal scratch']
  %s0 = inlined_call_operand.hbm [shape: f32[12,2,8,768], index: 0, kind: input, shape index: {}]
  %s1 = inlined_call_operand.hbm [shape: f32[12,768,512], index: 1, kind: input, shape index: {}]
  %s2 = inlined_call_operand.hbm [shape: f32[12,1,512], index: 2, kind: input, shape index: {}]
  %s3 = inlined_call_operand.hbm [shape: f32[12,2,512], index: 3, kind: output, shape index: {}]
  %s4 = sld [smem:[#allocation0]]
  $region57: #{tpu_custom_call.1} parent=0
    _
  %s6 = ssub.s32 1, %s4
  %s7 = scalar_select 0, %s6, %s4
  $region1: #{tpu_custom_call.1} parent=0
    #allocation2 [shape = 'u8[98304]{0}', space=vmem, size = 0x18000, scoped, tag = 'input window, operand 0']
    #allocation3 [shape = 's32[2]{0}', space=sflag, size = 0x8, scoped, tag = 'scoped memory for tpu_custom_call.1']
    #allocation4 [shape = 's32[2]{0}', space=sflag, size = 0x8, scoped, tag = 'scoped memory for tpu_custom_call.1']
    #allocation5 [shape = 'u8[3145728]{0}', space=vmem, size = 0x300000, scoped, tag = 'input window, operand 1']
    #allocation6 [shape = 's32[2]{0}', space=sflag, size = 0x8, scoped, tag = 'scoped memory for tpu_custom_call.1']
    #allocation7 [shape = 'u8[4096]{0}', space=vmem, size = 0x1000, scoped, tag = 'input window, operand 2']
    #allocation8 [shape = 'u8[8192]{0}', space=vmem, size = 0x2000, scoped, tag = 'output window, operand 0']
    %8 = vsyncpa [#allocation3], 0
    %s9 = scalar_lea.sflag [#allocation3], 1
    %10 = vsyncpa %s9, 0
    %11 = vsyncpa [#allocation6], 0
    %s12 = scalar_lea.sflag [#allocation6], 1
    %13 = vsyncpa %s12, 0
    %14 = vsyncpa [#allocation4], 0
    %s15 = scalar_lea.sflag [#allocation4], 1
    %16 = vsyncpa %s15, 0
    loop: start=0, step=1, limit=14
    $region2: #{tpu_custom_call.1} parent=1 // loop_pre_header
      _
    $region3: #{tpu_custom_call.1} parent=1 // loop_header
      %s18 = sphi 0, %s22
      %p19 = scmp.ge.s32.totalorder %s18, 14
      %s25 = sphi 0, %s37
      %s26 = sphi 0, %s33
      %s27 = sphi 0, %s25
      %s28 = sphi 0, %s26
      %s29 = sphi 0, %s27
      %s30 = sphi 0, %s28
      %s42 = sphi 0, %s44
      %s45 = sphi 0, %s42
      %s46 = sphi 0, %s45
      %s62 = sphi 0, %s46
      %s68 = sphi 0, %s70
      %s71 = sphi 0, %s68
      %s72 = sphi 0, %s71
      %s88 = sphi 0, %s72
      %s94 = sphi 0, %s96
      %s97 = sphi 0, %s94
      %s98 = sphi 0, %s97
      %s114 = sphi 0, %s98
      %s122 = sphi 0, %s124
      %s125 = sphi 0, %s122
      %s126 = sphi 0, %s125
      %s142 = sphi 0, %s126
    $region4: #{tpu_custom_call.1} parent=1 // loop_header_branch
      %21 = sbr.rel (%p19) target = $region8
    $region5: #{tpu_custom_call.1} parent=1 // loop_body
      %s23 = ssub.s32 %s18, 1
      %s24 = ssub.s32 %s18, 2
      %s31 = sadd.s32 1, %s26
      %p32 = scmp.ge.s32.totalorder %s31, 1
      %s33 = scalar_select %p32, 0, %s31
      %s34 = sadd.s32 1, %s25
      %s35 = scalar_select %p32, %s34, %s25
      %p36 = scmp.ge.s32.totalorder %s35, 12
      %s37 = scalar_select %p36, 0, %s35
      %s38 = ssub.s32 %s25, %s37
      %s39 = ssub.s32 %s26, %s33
      %s40 = sor.u32 %s38, %s39
      %p41 = scmp.eq.s32.totalorder %s40, 0
      %s43 = sadd.s32 %s42, 1
      %s44 = scalar_select %p41, %s42, %s43
      %p47 = pneg %p41
      %p48 = scmp.eq.s32.totalorder %s18, 11
      %p49 = por %p47, %p48
      %p50 = scmp.ne.s32.totalorder %s42, %s45
      %p51 = scmp.eq.s32.totalorder %s18, 0
      %p52 = por %p50, %p51
      %p53 = scmp.ne.s32.totalorder %s42, %s45
      %p54 = scmp.eq.s32.totalorder %s23, 11
      %p55 = por %p53, %p54
      %p56 = scmp.ne.s32.totalorder %s45, %s46
      %p57 = scmp.eq.s32.totalorder %s23, 0
      %p58 = por %p56, %p57
      %p59 = scmp.ne.s32.totalorder %s45, %s46
      %p60 = scmp.eq.s32.totalorder %s24, 11
      %p61 = por %p59, %p60
      %p63 = scmp.ne.s32.totalorder %s46, %s62
      %p64 = scmp.eq.s32.totalorder %s24, 0
      %p65 = por %p63, %p64
      %s66 = ssub.s32 %s25, %s37
      %p67 = scmp.eq.s32.totalorder %s66, 0
      %s69 = sadd.s32 %s68, 1
      %s70 = scalar_select %p67, %s68, %s69
      %p73 = pneg %p67
      %p74 = scmp.eq.s32.totalorder %s18, 11
      %p75 = por %p73, %p74
      %p76 = scmp.ne.s32.totalorder %s68, %s71
      %p77 = scmp.eq.s32.totalorder %s18, 0
      %p78 = por %p76, %p77
      %p79 = scmp.ne.s32.totalorder %s68, %s71
      %p80 = scmp.eq.s32.totalorder %s23, 11
      %p81 = por %p79, %p80
      %p82 = scmp.ne.s32.totalorder %s71, %s72
      %p83 = scmp.eq.s32.totalorder %s23, 0
      %p84 = por %p82, %p83
      %p85 = scmp.ne.s32.totalorder %s71, %s72
      %p86 = scmp.eq.s32.totalorder %s24, 11
      %p87 = por %p85, %p86
      %p89 = scmp.ne.s32.totalorder %s72, %s88
      %p90 = scmp.eq.s32.totalorder %s24, 0
      %p91 = por %p89, %p90
      %s92 = ssub.s32 %s25, %s37
      %p93 = scmp.eq.s32.totalorder %s92, 0
      %s95 = sadd.s32 %s94, 1
      %s96 = scalar_select %p93, %s94, %s95
      %p99 = pneg %p93
      %p100 = scmp.eq.s32.totalorder %s18, 11
      %p101 = por %p99, %p100
      %p102 = scmp.ne.s32.totalorder %s94, %s97
      %p103 = scmp.eq.s32.totalorder %s18, 0
      %p104 = por %p102, %p103
      %p105 = scmp.ne.s32.totalorder %s94, %s97
      %p106 = scmp.eq.s32.totalorder %s23, 11
      %p107 = por %p105, %p106
      %p108 = scmp.ne.s32.totalorder %s97, %s98
      %p109 = scmp.eq.s32.totalorder %s23, 0
      %p110 = por %p108, %p109
      %p111 = scmp.ne.s32.totalorder %s97, %s98
      %p112 = scmp.eq.s32.totalorder %s24, 11
      %p113 = por %p111, %p112
      %p115 = scmp.ne.s32.totalorder %s98, %s114
      %p116 = scmp.eq.s32.totalorder %s24, 0
      %p117 = por %p115, %p116
      %s118 = ssub.s32 %s25, %s37
      %s119 = ssub.s32 %s26, %s33
      %s120 = sor.u32 %s118, %s119
      %p121 = scmp.eq.s32.totalorder %s120, 0
      %s123 = sadd.s32 %s122, 1
      %s124 = scalar_select %p121, %s122, %s123
      %p127 = pneg %p121
      %p128 = scmp.eq.s32.totalorder %s18, 11
      %p129 = por %p127, %p128
      %p130 = scmp.ne.s32.totalorder %s122, %s125
      %p131 = scmp.eq.s32.totalorder %s18, 0
      %p132 = por %p130, %p131
      %p133 = scmp.ne.s32.totalorder %s122, %s125
      %p134 = scmp.eq.s32.totalorder %s23, 11
      %p135 = por %p133, %p134
      %p136 = scmp.ne.s32.totalorder %s125, %s126
      %p137 = scmp.eq.s32.totalorder %s23, 0
      %p138 = por %p136, %p137
      %p139 = scmp.ne.s32.totalorder %s125, %s126
      %p140 = scmp.eq.s32.totalorder %s24, 11
      %p141 = por %p139, %p140
      %p143 = scmp.ne.s32.totalorder %s126, %s142
      %p144 = scmp.eq.s32.totalorder %s24, 0
      %p145 = por %p143, %p144
      %p146 = scmp.le.s32.totalorder 1, %s18
      %p147 = scmp.lt.s32.totalorder %s18, 13
      %p148 = pnand %p146, %p147
      %p149 = pneg %p148
      // Predicated region
      $region9: #{tpu_custom_call.1} parent=5 // pred_check
        _
      $region10: #{tpu_custom_call.1} parent=5 // pred_check_branch
        %151 = sbr.rel (%p148) target = $region12
      $region11: #{tpu_custom_call.1} parent=5 // pred_region
        %s152 = ssub.s32 %s18, 1
      $region12: #{tpu_custom_call.1} parent=5 // pred_fallthru
        _
      %p153 = scmp.lt.s32.totalorder %s18, 12
      // Predicated region
      $region13: #{tpu_custom_call.1} parent=5 // pred_check
        %p154 = pneg %p153
      $region14: #{tpu_custom_call.1} parent=5 // pred_check_branch
        %156 = sbr.rel (%p154) target = $region16
      $region15: #{tpu_custom_call.1} parent=5 // pred_region
        // Predicated region
        $region17: #{tpu_custom_call.1} parent=15 // pred_check
          %p157 = pneg %p52
        $region18: #{tpu_custom_call.1} parent=15 // pred_check_branch
          %159 = sbr.rel (%p157) target = $region20
        $region19: #{tpu_custom_call.1} parent=15 // pred_region
          %s160 = sand.u32 %s42, 1
          %s161 = scalar_lea.sflag [#allocation3], %s160
          %s162 = sand.u32 %s42, 1
          %s163 = smul.addr %s162, 96
          %s164 = scalar_lea.vmem [#allocation2], %s163
          %s165 = smul.u32 2, %s26
          %167 = vsyncadd %s161, 0
          %s168 = smul.addr %s165, 6
          %s169 = smul.addr %s25, 12
          %s170 = sadd.s32 %s168, %s169
          %s171 = smul.addr %s170, 8
          %s172 = scalar_lea.hbm %s0, %s171
          %s173 = sshll.u32 %s172, 4
          %s174 = int_to_ptr.hbm [resolvable:$true] %s173
          %s175 = sshll.u32 %s164, 4
          %s176 = int_to_ptr.vmem [resolvable:$true] %s175
          %181 = dma.hbm_to_vmem [thread:$0]  %s174, 1536, %s176, %s161, 768, 768, 48
        $region20: #{tpu_custom_call.1} parent=15 // pred_fallthru
          _
        // Predicated region
        $region21: #{tpu_custom_call.1} parent=15 // pred_check
          %p182 = pneg %p78
        $region22: #{tpu_custom_call.1} parent=15 // pred_check_branch
          %184 = sbr.rel (%p182) target = $region24
        $region23: #{tpu_custom_call.1} parent=15 // pred_region
          %s185 = sand.u32 %s18, 1
          %s186 = scalar_lea.sflag [#allocation6], %s185
          %s187 = sand.u32 %s68, 1
          %s188 = smul.addr %s187, 3072
          %s189 = scalar_lea.vmem [#allocation5], %s188
          %191 = vsyncadd %s186, 0
          %s192 = smul.addr %s25, 384
          %s193 = smul.addr %s192, 8
          %s194 = scalar_lea.hbm %s1, %s193
          %s195 = sshll.u32 %s194, 4
          %s196 = int_to_ptr.hbm [resolvable:$true] %s195
          %s197 = sshll.u32 %s189, 4
          %s198 = int_to_ptr.vmem [resolvable:$true] %s197
          %203 = dma.hbm_to_vmem [thread:$0]  %s196, 49152, %s198, %s186, 512, 512, 32
        $region24: #{tpu_custom_call.1} parent=15 // pred_fallthru
          _
        // Predicated region
        $region25: #{tpu_custom_call.1} parent=15 // pred_check
          %p204 = pneg %p104
        $region26: #{tpu_custom_call.1} parent=15 // pred_check_branch
          %206 = sbr.rel (%p204) target = $region28
        $region27: #{tpu_custom_call.1} parent=15 // pred_region
          %s207 = sand.u32 %s18, 1
          %s208 = scalar_lea.sflag [#allocation6], %s207
          %s209 = sand.u32 %s94, 1
          %s210 = smul.addr %s209, 4
          %s211 = scalar_lea.vmem [#allocation7], %s210
          %213 = vsyncadd %s208, 0
          %s214 = smul.addr %s25, 4
          %s215 = scalar_lea.hbm %s2, %s214
          %s217 = sshll.u32 %s215, 4
          %s218 = int_to_ptr.hbm [resolvable:$true] %s217
          %s219 = sshll.u32 %s211, 4
          %s220 = int_to_ptr.vmem [resolvable:$true] %s219
          %222 = dma.hbm_to_vmem [thread:$0]  %s218, 64, %s220, %s208
        $region28: #{tpu_custom_call.1} parent=15 // pred_fallthru
          _
      $region16: #{tpu_custom_call.1} parent=5 // pred_fallthru
        _
      %p223 = scmp.le.s32.totalorder 1, %s18
      %p224 = scmp.lt.s32.totalorder %s18, 13
      %p225 = pnand %p223, %p224
      %p226 = pneg %p225
      // Predicated region
      $region29: #{tpu_custom_call.1} parent=5 // pred_check
        _
      $region30: #{tpu_custom_call.1} parent=5 // pred_check_branch
        %228 = sbr.rel (%p225) target = $region32
      $region31: #{tpu_custom_call.1} parent=5 // pred_region
        %s229 = ssub.s32 %s18, 1
        %s230 = sand.u32 %s45, 1
        %s231 = scalar_lea.sflag [#allocation3], %s230
        %s232 = sand.u32 %s45, 1
        %s233 = smul.addr %s232, 96
        %s234 = scalar_lea.vmem [#allocation2], %s233
        // Predicated region
        $region33: #{tpu_custom_call.1} parent=31 // pred_check
          %p235 = pneg %p58
        $region34: #{tpu_custom_call.1} parent=31 // pred_check_branch
          %237 = sbr.rel (%p235) target = $region36
        $region35: #{tpu_custom_call.1} parent=31 // pred_region
          %239 = dma.done %s231, 1536
        $region36: #{tpu_custom_call.1} parent=31 // pred_fallthru
          _
        %s240 = sand.u32 %s23, 1
        %s241 = scalar_lea.sflag [#allocation6], %s240
        %s242 = sand.u32 %s71, 1
        %s243 = smul.addr %s242, 3072
        %s244 = scalar_lea.vmem [#allocation5], %s243
        // Predicated region
        $region37: #{tpu_custom_call.1} parent=31 // pred_check
          %p245 = pneg %p84
        $region38: #{tpu_custom_call.1} parent=31 // pred_check_branch
          %247 = sbr.rel (%p245) target = $region40
        $region39: #{tpu_custom_call.1} parent=31 // pred_region
          %249 = dma.done %s241, 49152
        $region40: #{tpu_custom_call.1} parent=31 // pred_fallthru
          _
        %s250 = sand.u32 %s23, 1
        %s251 = scalar_lea.sflag [#allocation6], %s250
        %s252 = sand.u32 %s97, 1
        %s253 = smul.addr %s252, 4
        %s254 = scalar_lea.vmem [#allocation7], %s253
        // Predicated region
        $region41: #{tpu_custom_call.1} parent=31 // pred_check
          %p255 = pneg %p110
        $region42: #{tpu_custom_call.1} parent=31 // pred_check_branch
          %257 = sbr.rel (%p255) target = $region44
        $region43: #{tpu_custom_call.1} parent=31 // pred_region
          %259 = dma.done %s251, 64
        $region44: #{tpu_custom_call.1} parent=31 // pred_fallthru
          _
        %s260 = sand.u32 %s45, 1
        %s261 = scalar_lea.sflag [#allocation3], %s260
        %s262 = sand.u32 %s45, 1
        %s263 = smul.addr %s262, 96
        %s264 = scalar_lea.vmem [#allocation2], %s263
        %p265 = pneg %p58
        %p266 = pneg %p55
        %s267 = sand.u32 %s23, 1
        %s268 = scalar_lea.sflag [#allocation6], %s267
        %s269 = sand.u32 %s71, 1
        %s270 = smul.addr %s269, 3072
        %s271 = scalar_lea.vmem [#allocation5], %s270
        %p272 = pneg %p84
        %p273 = pneg %p81
        %s274 = sand.u32 %s23, 1
        %s275 = scalar_lea.sflag [#allocation6], %s274
        %s276 = sand.u32 %s97, 1
        %s277 = smul.addr %s276, 4
        %s278 = scalar_lea.vmem [#allocation7], %s277
        %p279 = pneg %p110
        %p280 = pneg %p107
        %p281 = pneg %p138
        %p282 = pneg %p135
        %s283 = sand.u32 %s125, 1
        %s284 = scalar_lea.sflag [#allocation4], %s283
        %s285 = sand.u32 %s125, 1
        %s286 = smul.addr %s285, 8
        %s287 = scalar_lea.vmem [#allocation8], %s286
        %s288 = smul.u32 2, %s28
        %s289 = smul.u32 0, 6
        %s290 = smul.addr %s289, 8
        %s291 = scalar_lea.vmem %s234, %s290 [#allocation2]
        %v292 = vld [vmem:[%s291] sm:$0xff]
        %v293 = vld [vmem:[%s291 + $0x8] sm:$0xff]
        %v294 = vld [vmem:[%s291 + $0x10] sm:$0xff]
        %v295 = vld [vmem:[%s291 + $0x18] sm:$0xff]
        %v296 = vld [vmem:[%s291 + $0x20] sm:$0xff]
        %v297 = vld [vmem:[%s291 + $0x28] sm:$0xff]
        %v298 = vld [vmem:[%s291 + $0x30] sm:$0xff]
        %v299 = vld [vmem:[%s291 + $0x38] sm:$0xff]
        %v300 = vld [vmem:[%s291 + $0x40] sm:$0xff]
        %v301 = vld [vmem:[%s291 + $0x48] sm:$0xff]
        %v302 = vld [vmem:[%s291 + $0x50] sm:$0xff]
        %v303 = vld [vmem:[%s291 + $0x58] sm:$0xff]
        %v304 = vrot.slane %v292, 4
        %v305 = vadd.f32 %v292, %v304
        %v306 = vrot.slane %v305, 2
        %v307 = vadd.f32 %v305, %v306
        %v308 = vrot.slane %v307, 1
        %v309 = vadd.f32 %v307, %v308
        %v310 = vrot.slane %v293, 4
        %v311 = vadd.f32 %v293, %v310
        %v312 = vrot.slane %v311, 2
        %v313 = vadd.f32 %v311, %v312
        %v314 = vrot.slane %v313, 1
        %v315 = vadd.f32 %v313, %v314
        %v316 = vrot.slane %v294, 4
        %v317 = vadd.f32 %v294, %v316
        %v318 = vrot.slane %v317, 2
        %v319 = vadd.f32 %v317, %v318
        %v320 = vrot.slane %v319, 1
        %v321 = vadd.f32 %v319, %v320
        %v322 = vrot.slane %v295, 4
        %v323 = vadd.f32 %v295, %v322
        %v324 = vrot.slane %v323, 2
        %v325 = vadd.f32 %v323, %v324
        %v326 = vrot.slane %v325, 1
        %v327 = vadd.f32 %v325, %v326
        %v328 = vrot.slane %v296, 4
        %v329 = vadd.f32 %v296, %v328
        %v330 = vrot.slane %v329, 2
        %v331 = vadd.f32 %v329, %v330
        %v332 = vrot.slane %v331, 1
        %v333 = vadd.f32 %v331, %v332
        %v334 = vrot.slane %v297, 4
        %v335 = vadd.f32 %v297, %v334
        %v336 = vrot.slane %v335, 2
        %v337 = vadd.f32 %v335, %v336
        %v338 = vrot.slane %v337, 1
        %v339 = vadd.f32 %v337, %v338
        %v340 = vrot.slane %v298, 4
        %v341 = vadd.f32 %v298, %v340
        %v342 = vrot.slane %v341, 2
        %v343 = vadd.f32 %v341, %v342
        %v344 = vrot.slane %v343, 1
        %v345 = vadd.f32 %v343, %v344
        %v346 = vrot.slane %v299, 4
        %v347 = vadd.f32 %v299, %v346
        %v348 = vrot.slane %v347, 2
        %v349 = vadd.f32 %v347, %v348
        %v350 = vrot.slane %v349, 1
        %v351 = vadd.f32 %v349, %v350
        %v352 = vrot.slane %v300, 4
        %v353 = vadd.f32 %v300, %v352
        %v354 = vrot.slane %v353, 2
        %v355 = vadd.f32 %v353, %v354
        %v356 = vrot.slane %v355, 1
        %v357 = vadd.f32 %v355, %v356
        %v358 = vrot.slane %v301, 4
        %v359 = vadd.f32 %v301, %v358
        %v360 = vrot.slane %v359, 2
        %v361 = vadd.f32 %v359, %v360
        %v362 = vrot.slane %v361, 1
        %v363 = vadd.f32 %v361, %v362
        %v364 = vrot.slane %v302, 4
        %v365 = vadd.f32 %v302, %v364
        %v366 = vrot.slane %v365, 2
        %v367 = vadd.f32 %v365, %v366
        %v368 = vrot.slane %v367, 1
        %v369 = vadd.f32 %v367, %v368
        %v370 = vrot.slane %v303, 4
        %v371 = vadd.f32 %v303, %v370
        %v372 = vrot.slane %v371, 2
        %v373 = vadd.f32 %v371, %v372
        %v374 = vrot.slane %v373, 1
        %v375 = vadd.f32 %v373, %v374
        %v376 = vadd.f32 %v309, 0.0
        %v377 = vadd.f32 %v315, 0.0
        %v378 = vadd.f32 %v321, 0.0
        %v379 = vadd.f32 %v327, 0.0
        %v380 = vadd.f32 %v333, 0.0
        %v381 = vadd.f32 %v339, 0.0
        %v382 = vadd.f32 %v345, 0.0
        %v383 = vadd.f32 %v351, 0.0
        %v384 = vadd.f32 %v357, 0.0
        %v385 = vadd.f32 %v363, 0.0
        %v386 = vadd.f32 %v369, 0.0
        %v387 = vadd.f32 %v375, 0.0
        %v388 = vmul.f32 %v292, %v292
        %v389 = vmul.f32 %v293, %v293
        %v390 = vmul.f32 %v294, %v294
        %v391 = vmul.f32 %v295, %v295
        %v392 = vmul.f32 %v296, %v296
        %v393 = vmul.f32 %v297, %v297
        %v394 = vmul.f32 %v298, %v298
        %v395 = vmul.f32 %v299, %v299
        %v396 = vmul.f32 %v300, %v300
        %v397 = vmul.f32 %v301, %v301
        %v398 = vmul.f32 %v302, %v302
        %v399 = vmul.f32 %v303, %v303
        %v400 = vrot.slane %v388, 4
        %v401 = vadd.f32 %v388, %v400
        %v402 = vrot.slane %v401, 2
        %v403 = vadd.f32 %v401, %v402
        %v404 = vrot.slane %v403, 1
        %v405 = vadd.f32 %v403, %v404
        %v406 = vrot.slane %v389, 4
        %v407 = vadd.f32 %v389, %v406
        %v408 = vrot.slane %v407, 2
        %v409 = vadd.f32 %v407, %v408
        %v410 = vrot.slane %v409, 1
        %v411 = vadd.f32 %v409, %v410
        %v412 = vrot.slane %v390, 4
        %v413 = vadd.f32 %v390, %v412
        %v414 = vrot.slane %v413, 2
        %v415 = vadd.f32 %v413, %v414
        %v416 = vrot.slane %v415, 1
        %v417 = vadd.f32 %v415, %v416
        %v418 = vrot.slane %v391, 4
        %v419 = vadd.f32 %v391, %v418
        %v420 = vrot.slane %v419, 2
        %v421 = vadd.f32 %v419, %v420
        %v422 = vrot.slane %v421, 1
        %v423 = vadd.f32 %v421, %v422
        %v424 = vrot.slane %v392, 4
        %v425 = vadd.f32 %v392, %v424
        %v426 = vrot.slane %v425, 2
        %v427 = vadd.f32 %v425, %v426
        %v428 = vrot.slane %v427, 1
        %v429 = vadd.f32 %v427, %v428
        %v430 = vrot.slane %v393, 4
        %v431 = vadd.f32 %v393, %v430
        %v432 = vrot.slane %v431, 2
        %v433 = vadd.f32 %v431, %v432
        %v434 = vrot.slane %v433, 1
        %v435 = vadd.f32 %v433, %v434
        %v436 = vrot.slane %v394, 4
        %v437 = vadd.f32 %v394, %v436
        %v438 = vrot.slane %v437, 2
        %v439 = vadd.f32 %v437, %v438
        %v440 = vrot.slane %v439, 1
        %v441 = vadd.f32 %v439, %v440
        %v442 = vrot.slane %v395, 4
        %v443 = vadd.f32 %v395, %v442
        %v444 = vrot.slane %v443, 2
        %v445 = vadd.f32 %v443, %v444
        %v446 = vrot.slane %v445, 1
        %v447 = vadd.f32 %v445, %v446
        %v448 = vrot.slane %v396, 4
        %v449 = vadd.f32 %v396, %v448
        %v450 = vrot.slane %v449, 2
        %v451 = vadd.f32 %v449, %v450
        %v452 = vrot.slane %v451, 1
        %v453 = vadd.f32 %v451, %v452
        %v454 = vrot.slane %v397, 4
        %v455 = vadd.f32 %v397, %v454
        %v456 = vrot.slane %v455, 2
        %v457 = vadd.f32 %v455, %v456
        %v458 = vrot.slane %v457, 1
        %v459 = vadd.f32 %v457, %v458
        %v460 = vrot.slane %v398, 4
        %v461 = vadd.f32 %v398, %v460
        %v462 = vrot.slane %v461, 2
        %v463 = vadd.f32 %v461, %v462
        %v464 = vrot.slane %v463, 1
        %v465 = vadd.f32 %v463, %v464
        %v466 = vrot.slane %v399, 4
        %v467 = vadd.f32 %v399, %v466
        %v468 = vrot.slane %v467, 2
        %v469 = vadd.f32 %v467, %v468
        %v470 = vrot.slane %v469, 1
        %v471 = vadd.f32 %v469, %v470
        %v472 = vadd.f32 %v405, 0.0
        %v473 = vadd.f32 %v411, 0.0
        %v474 = vadd.f32 %v417, 0.0
        %v475 = vadd.f32 %v423, 0.0
        %v476 = vadd.f32 %v429, 0.0
        %v477 = vadd.f32 %v435, 0.0
        %v478 = vadd.f32 %v441, 0.0
        %v479 = vadd.f32 %v447, 0.0
        %v480 = vadd.f32 %v453, 0.0
        %v481 = vadd.f32 %v459, 0.0
        %v482 = vadd.f32 %v465, 0.0
        %v483 = vadd.f32 %v471, 0.0
        %v484 = vmul.f32 %v376, 0.125
        %v485 = vmul.f32 %v377, 0.125
        %v486 = vmul.f32 %v378, 0.125
        %v487 = vmul.f32 %v379, 0.125
        %v488 = vmul.f32 %v380, 0.125
        %v489 = vmul.f32 %v381, 0.125
        %v490 = vmul.f32 %v382, 0.125
        %v491 = vmul.f32 %v383, 0.125
        %v492 = vmul.f32 %v384, 0.125
        %v493 = vmul.f32 %v385, 0.125
        %v494 = vmul.f32 %v386, 0.125
        %v495 = vmul.f32 %v387, 0.125
        %v496 = vmul.f32 %v376, %v484
        %v497 = vmul.f32 %v377, %v485
        %v498 = vmul.f32 %v378, %v486
        %v499 = vmul.f32 %v379, %v487
        %v500 = vmul.f32 %v380, %v488
        %v501 = vmul.f32 %v381, %v489
        %v502 = vmul.f32 %v382, %v490
        %v503 = vmul.f32 %v383, %v491
        %v504 = vmul.f32 %v384, %v492
        %v505 = vmul.f32 %v385, %v493
        %v506 = vmul.f32 %v386, %v494
        %v507 = vmul.f32 %v387, %v495
        %v508 = vsub.f32 %v472, %v496
        %v509 = vsub.f32 %v473, %v497
        %v510 = vsub.f32 %v474, %v498
        %v511 = vsub.f32 %v475, %v499
        %v512 = vsub.f32 %v476, %v500
        %v513 = vsub.f32 %v477, %v501
        %v514 = vsub.f32 %v478, %v502
        %v515 = vsub.f32 %v479, %v503
        %v516 = vsub.f32 %v480, %v504
        %v517 = vsub.f32 %v481, %v505
        %v518 = vsub.f32 %v482, %v506
        %v519 = vsub.f32 %v483, %v507
        %v520 = vmax.f32 %v508, 0.0
        %v521 = vmax.f32 %v509, 0.0
        %v522 = vmax.f32 %v510, 0.0
        %v523 = vmax.f32 %v511, 0.0
        %v524 = vmax.f32 %v512, 0.0
        %v525 = vmax.f32 %v513, 0.0
        %v526 = vmax.f32 %v514, 0.0
        %v527 = vmax.f32 %v515, 0.0
        %v528 = vmax.f32 %v516, 0.0
        %v529 = vmax.f32 %v517, 0.0
        %v530 = vmax.f32 %v518, 0.0
        %v531 = vmax.f32 %v519, 0.0
        %v532 = vadd.f32 %v520, 2.3e-08
        %v533 = vadd.f32 %v521, 2.3e-08
        %v534 = vadd.f32 %v522, 2.3e-08
        %v535 = vadd.f32 %v523, 2.3e-08
        %v536 = vadd.f32 %v524, 2.3e-08
        %v537 = vadd.f32 %v525, 2.3e-08
        %v538 = vadd.f32 %v526, 2.3e-08
        %v539 = vadd.f32 %v527, 2.3e-08
        %v540 = vadd.f32 %v528, 2.3e-08
        %v541 = vadd.f32 %v529, 2.3e-08
        %v542 = vadd.f32 %v530, 2.3e-08
        %v543 = vadd.f32 %v531, 2.3e-08
        %v544 = vmul.f32 %v532, 0.125
        %v545 = vmul.f32 %v533, 0.125
        %v546 = vmul.f32 %v534, 0.125
        %v547 = vmul.f32 %v535, 0.125
        %v548 = vmul.f32 %v536, 0.125
        %v549 = vmul.f32 %v537, 0.125
        %v550 = vmul.f32 %v538, 0.125
        %v551 = vmul.f32 %v539, 0.125
        %v552 = vmul.f32 %v540, 0.125
        %v553 = vmul.f32 %v541, 0.125
        %v554 = vmul.f32 %v542, 0.125
        %v555 = vmul.f32 %v543, 0.125
        %v556 = vrsqrt.pop %v544
        %v557 = vmul.f32 %v556, %v544
        %v558 = vmul.f32 %v557, %v556
        %v559 = vmul.f32 0.5, %v558
        %v560 = vsub.f32 1.5, %v559
        %v561 = vmul.f32 %v556, %v560
        %v562 = vmul.f32 %v544, %v561
        %vm563 = vcmp.eq.f32.partialorder %v544, inf
        %v564 = vsel %vm563, %v544, %v562
        %vm565 = vcmp.eq.f32.partialorder %v544, 0.0
        %v566 = vand.u32 %v544, 2147483648
        %v567 = vsel %vm565, %v566, %v564
        %v568 = vrsqrt.pop %v545
        %v569 = vmul.f32 %v568, %v545
        %v570 = vmul.f32 %v569, %v568
        %v571 = vmul.f32 0.5, %v570
        %v572 = vsub.f32 1.5, %v571
        %v573 = vmul.f32 %v568, %v572
        %v574 = vmul.f32 %v545, %v573
        %vm575 = vcmp.eq.f32.partialorder %v545, inf
        %v576 = vsel %vm575, %v545, %v574
        %vm577 = vcmp.eq.f32.partialorder %v545, 0.0
        %v578 = vand.u32 %v545, 2147483648
        %v579 = vsel %vm577, %v578, %v576
        %v580 = vrsqrt.pop %v546
        %v581 = vmul.f32 %v580, %v546
        %v582 = vmul.f32 %v581, %v580
        %v583 = vmul.f32 0.5, %v582
        %v584 = vsub.f32 1.5, %v583
        %v585 = vmul.f32 %v580, %v584
        %v586 = vmul.f32 %v546, %v585
        %vm587 = vcmp.eq.f32.partialorder %v546, inf
        %v588 = vsel %vm587, %v546, %v586
        %vm589 = vcmp.eq.f32.partialorder %v546, 0.0
        %v590 = vand.u32 %v546, 2147483648
        %v591 = vsel %vm589, %v590, %v588
        %v592 = vrsqrt.pop %v547
        %v593 = vmul.f32 %v592, %v547
        %v594 = vmul.f32 %v593, %v592
        %v595 = vmul.f32 0.5, %v594
        %v596 = vsub.f32 1.5, %v595
        %v597 = vmul.f32 %v592, %v596
        %v598 = vmul.f32 %v547, %v597
        %vm599 = vcmp.eq.f32.partialorder %v547, inf
        %v600 = vsel %vm599, %v547, %v598
        %vm601 = vcmp.eq.f32.partialorder %v547, 0.0
        %v602 = vand.u32 %v547, 2147483648
        %v603 = vsel %vm601, %v602, %v600
        %v604 = vrsqrt.pop %v548
        %v605 = vmul.f32 %v604, %v548
        %v606 = vmul.f32 %v605, %v604
        %v607 = vmul.f32 0.5, %v606
        %v608 = vsub.f32 1.5, %v607
        %v609 = vmul.f32 %v604, %v608
        %v610 = vmul.f32 %v548, %v609
        %vm611 = vcmp.eq.f32.partialorder %v548, inf
        %v612 = vsel %vm611, %v548, %v610
        %vm613 = vcmp.eq.f32.partialorder %v548, 0.0
        %v614 = vand.u32 %v548, 2147483648
        %v615 = vsel %vm613, %v614, %v612
        %v616 = vrsqrt.pop %v549
        %v617 = vmul.f32 %v616, %v549
        %v618 = vmul.f32 %v617, %v616
        %v619 = vmul.f32 0.5, %v618
        %v620 = vsub.f32 1.5, %v619
        %v621 = vmul.f32 %v616, %v620
        %v622 = vmul.f32 %v549, %v621
        %vm623 = vcmp.eq.f32.partialorder %v549, inf
        %v624 = vsel %vm623, %v549, %v622
        %vm625 = vcmp.eq.f32.partialorder %v549, 0.0
        %v626 = vand.u32 %v549, 2147483648
        %v627 = vsel %vm625, %v626, %v624
        %v628 = vrsqrt.pop %v550
        %v629 = vmul.f32 %v628, %v550
        %v630 = vmul.f32 %v629, %v628
        %v631 = vmul.f32 0.5, %v630
        %v632 = vsub.f32 1.5, %v631
        %v633 = vmul.f32 %v628, %v632
        %v634 = vmul.f32 %v550, %v633
        %vm635 = vcmp.eq.f32.partialorder %v550, inf
        %v636 = vsel %vm635, %v550, %v634
        %vm637 = vcmp.eq.f32.partialorder %v550, 0.0
        %v638 = vand.u32 %v550, 2147483648
        %v639 = vsel %vm637, %v638, %v636
        %v640 = vrsqrt.pop %v551
        %v641 = vmul.f32 %v640, %v551
        %v642 = vmul.f32 %v641, %v640
        %v643 = vmul.f32 0.5, %v642
        %v644 = vsub.f32 1.5, %v643
        %v645 = vmul.f32 %v640, %v644
        %v646 = vmul.f32 %v551, %v645
        %vm647 = vcmp.eq.f32.partialorder %v551, inf
        %v648 = vsel %vm647, %v551, %v646
        %vm649 = vcmp.eq.f32.partialorder %v551, 0.0
        %v650 = vand.u32 %v551, 2147483648
        %v651 = vsel %vm649, %v650, %v648
        %v652 = vrsqrt.pop %v552
        %v653 = vmul.f32 %v652, %v552
        %v654 = vmul.f32 %v653, %v652
        %v655 = vmul.f32 0.5, %v654
        %v656 = vsub.f32 1.5, %v655
        %v657 = vmul.f32 %v652, %v656
        %v658 = vmul.f32 %v552, %v657
        %vm659 = vcmp.eq.f32.partialorder %v552, inf
        %v660 = vsel %vm659, %v552, %v658
        %vm661 = vcmp.eq.f32.partialorder %v552, 0.0
        %v662 = vand.u32 %v552, 2147483648
        %v663 = vsel %vm661, %v662, %v660
        %v664 = vrsqrt.pop %v553
        %v665 = vmul.f32 %v664, %v553
        %v666 = vmul.f32 %v665, %v664
        %v667 = vmul.f32 0.5, %v666
        %v668 = vsub.f32 1.5, %v667
        %v669 = vmul.f32 %v664, %v668
        %v670 = vmul.f32 %v553, %v669
        %vm671 = vcmp.eq.f32.partialorder %v553, inf
        %v672 = vsel %vm671, %v553, %v670
        %vm673 = vcmp.eq.f32.partialorder %v553, 0.0
        %v674 = vand.u32 %v553, 2147483648
        %v675 = vsel %vm673, %v674, %v672
        %v676 = vrsqrt.pop %v554
        %v677 = vmul.f32 %v676, %v554
        %v678 = vmul.f32 %v677, %v676
        %v679 = vmul.f32 0.5, %v678
        %v680 = vsub.f32 1.5, %v679
        %v681 = vmul.f32 %v676, %v680
        %v682 = vmul.f32 %v554, %v681
        %vm683 = vcmp.eq.f32.partialorder %v554, inf
        %v684 = vsel %vm683, %v554, %v682
        %vm685 = vcmp.eq.f32.partialorder %v554, 0.0
        %v686 = vand.u32 %v554, 2147483648
        %v687 = vsel %vm685, %v686, %v684
        %v688 = vrsqrt.pop %v555
        %v689 = vmul.f32 %v688, %v555
        %v690 = vmul.f32 %v689, %v688
        %v691 = vmul.f32 0.5, %v690
        %v692 = vsub.f32 1.5, %v691
        %v693 = vmul.f32 %v688, %v692
        %v694 = vmul.f32 %v555, %v693
        %vm695 = vcmp.eq.f32.partialorder %v555, inf
        %v696 = vsel %vm695, %v555, %v694
        %vm697 = vcmp.eq.f32.partialorder %v555, 0.0
        %v698 = vand.u32 %v555, 2147483648
        %v699 = vsel %vm697, %v698, %v696
        %v700 = vadd.f32 %v484, %v567
        %v701 = vadd.f32 %v485, %v579
        %v702 = vadd.f32 %v486, %v591
        %v703 = vadd.f32 %v487, %v603
        %v704 = vadd.f32 %v488, %v615
        %v705 = vadd.f32 %v489, %v627
        %v706 = vadd.f32 %v490, %v639
        %v707 = vadd.f32 %v491, %v651
        %v708 = vadd.f32 %v492, %v663
        %v709 = vadd.f32 %v493, %v675
        %v710 = vadd.f32 %v494, %v687
        %v711 = vadd.f32 %v495, %v699
        %v712 = vmul.f32 %v700, 0.5
        %v713 = vmul.f32 %v701, 0.5
        %v714 = vmul.f32 %v702, 0.5
        %v715 = vmul.f32 %v703, 0.5
        %v716 = vmul.f32 %v704, 0.5
        %v717 = vmul.f32 %v705, 0.5
        %v718 = vmul.f32 %v706, 0.5
        %v719 = vmul.f32 %v707, 0.5
        %v720 = vmul.f32 %v708, 0.5
        %v721 = vmul.f32 %v709, 0.5
        %v722 = vmul.f32 %v710, 0.5
        %v723 = vmul.f32 %v711, 0.5
        %v724 = vld [vmem:[%s244] sm:$0xff]
        %v725 = vld [vmem:[%s244 + $0x8] sm:$0xff]
        %v726 = vld [vmem:[%s244 + $0x10] sm:$0xff]
        %v727 = vld [vmem:[%s244 + $0x18] sm:$0xff]
        %v728 = vld [vmem:[%s244 + $0x20] sm:$0xff]
        %v729 = vld [vmem:[%s244 + $0x28] sm:$0xff]
        %v730 = vld [vmem:[%s244 + $0x30] sm:$0xff]
        %v731 = vld [vmem:[%s244 + $0x38] sm:$0xff]
        %v732 = vld [vmem:[%s244 + $0x40] sm:$0xff]
        %v733 = vld [vmem:[%s244 + $0x48] sm:$0xff]
        %v734 = vld [vmem:[%s244 + $0x50] sm:$0xff]
        %v735 = vld [vmem:[%s244 + $0x58] sm:$0xff]
        %v736 = vld [vmem:[%s244 + $0x60] sm:$0xff]
        %v737 = vld [vmem:[%s244 + $0x68] sm:$0xff]
        %v738 = vld [vmem:[%s244 + $0x70] sm:$0xff]
        %v739 = vld [vmem:[%s244 + $0x78] sm:$0xff]
        %v740 = vld [vmem:[%s244 + $0x80] sm:$0xff]
        %v741 = vld [vmem:[%s244 + $0x88] sm:$0xff]
        %v742 = vld [vmem:[%s244 + $0x90] sm:$0xff]
        %v743 = vld [vmem:[%s244 + $0x98] sm:$0xff]
        %v744 = vld [vmem:[%s244 + $0xa0] sm:$0xff]
        %v745 = vld [vmem:[%s244 + $0xa8] sm:$0xff]
        %v746 = vld [vmem:[%s244 + $0xb0] sm:$0xff]
        %v747 = vld [vmem:[%s244 + $0xb8] sm:$0xff]
        %v748 = vld [vmem:[%s244 + $0xc0] sm:$0xff]
        %v749 = vld [vmem:[%s244 + $0xc8] sm:$0xff]
        %v750 = vld [vmem:[%s244 + $0xd0] sm:$0xff]
        %v751 = vld [vmem:[%s244 + $0xd8] sm:$0xff]
        %v752 = vld [vmem:[%s244 + $0xe0] sm:$0xff]
        %v753 = vld [vmem:[%s244 + $0xe8] sm:$0xff]
        %v754 = vld [vmem:[%s244 + $0xf0] sm:$0xff]
        %v755 = vld [vmem:[%s244 + $0xf8] sm:$0xff]
        %v756 = vld [vmem:[%s244 + $0x100] sm:$0xff]
        %v757 = vld [vmem:[%s244 + $0x108] sm:$0xff]
        %v758 = vld [vmem:[%s244 + $0x110] sm:$0xff]
        %v759 = vld [vmem:[%s244 + $0x118] sm:$0xff]
        %v760 = vld [vmem:[%s244 + $0x120] sm:$0xff]
        %v761 = vld [vmem:[%s244 + $0x128] sm:$0xff]
        %v762 = vld [vmem:[%s244 + $0x130] sm:$0xff]
        %v763 = vld [vmem:[%s244 + $0x138] sm:$0xff]
        %v764 = vld [vmem:[%s244 + $0x140] sm:$0xff]
        %v765 = vld [vmem:[%s244 + $0x148] sm:$0xff]
        %v766 = vld [vmem:[%s244 + $0x150] sm:$0xff]
        %v767 = vld [vmem:[%s244 + $0x158] sm:$0xff]
        %v768 = vld [vmem:[%s244 + $0x160] sm:$0xff]
        %v769 = vld [vmem:[%s244 + $0x168] sm:$0xff]
        %v770 = vld [vmem:[%s244 + $0x170] sm:$0xff]
        %v771 = vld [vmem:[%s244 + $0x178] sm:$0xff]
        %v772 = vld [vmem:[%s244 + $0x180] sm:$0xff]
        %v773 = vld [vmem:[%s244 + $0x188] sm:$0xff]
        %v774 = vld [vmem:[%s244 + $0x190] sm:$0xff]
        %v775 = vld [vmem:[%s244 + $0x198] sm:$0xff]
        %v776 = vld [vmem:[%s244 + $0x1a0] sm:$0xff]
        %v777 = vld [vmem:[%s244 + $0x1a8] sm:$0xff]
        %v778 = vld [vmem:[%s244 + $0x1b0] sm:$0xff]
        %v779 = vld [vmem:[%s244 + $0x1b8] sm:$0xff]
        %v780 = vld [vmem:[%s244 + $0x1c0] sm:$0xff]
        %v781 = vld [vmem:[%s244 + $0x1c8] sm:$0xff]
        %v782 = vld [vmem:[%s244 + $0x1d0] sm:$0xff]
        %v783 = vld [vmem:[%s244 + $0x1d8] sm:$0xff]
        %v784 = vld [vmem:[%s244 + $0x1e0] sm:$0xff]
        %v785 = vld [vmem:[%s244 + $0x1e8] sm:$0xff]
        %v786 = vld [vmem:[%s244 + $0x1f0] sm:$0xff]
        %v787 = vld [vmem:[%s244 + $0x1f8] sm:$0xff]
        %v788 = vld [vmem:[%s244 + $0x200] sm:$0xff]
        %v789 = vld [vmem:[%s244 + $0x208] sm:$0xff]
        %v790 = vld [vmem:[%s244 + $0x210] sm:$0xff]
        %v791 = vld [vmem:[%s244 + $0x218] sm:$0xff]
        %v792 = vld [vmem:[%s244 + $0x220] sm:$0xff]
        %v793 = vld [vmem:[%s244 + $0x228] sm:$0xff]
        %v794 = vld [vmem:[%s244 + $0x230] sm:$0xff]
        %v795 = vld [vmem:[%s244 + $0x238] sm:$0xff]
        %v796 = vld [vmem:[%s244 + $0x240] sm:$0xff]
        %v797 = vld [vmem:[%s244 + $0x248] sm:$0xff]
        %v798 = vld [vmem:[%s244 + $0x250] sm:$0xff]
        %v799 = vld [vmem:[%s244 + $0x258] sm:$0xff]
        %v800 = vld [vmem:[%s244 + $0x260] sm:$0xff]
        %v801 = vld [vmem:[%s244 + $0x268] sm:$0xff]
        %v802 = vld [vmem:[%s244 + $0x270] sm:$0xff]
        %v803 = vld [vmem:[%s244 + $0x278] sm:$0xff]
        %v804 = vld [vmem:[%s244 + $0x280] sm:$0xff]
        %v805 = vld [vmem:[%s244 + $0x288] sm:$0xff]
        %v806 = vld [vmem:[%s244 + $0x290] sm:$0xff]
        %v807 = vld [vmem:[%s244 + $0x298] sm:$0xff]
        %v808 = vld [vmem:[%s244 + $0x2a0] sm:$0xff]
        %v809 = vld [vmem:[%s244 + $0x2a8] sm:$0xff]
        %v810 = vld [vmem:[%s244 + $0x2b0] sm:$0xff]
        %v811 = vld [vmem:[%s244 + $0x2b8] sm:$0xff]
        %v812 = vld [vmem:[%s244 + $0x2c0] sm:$0xff]
        %v813 = vld [vmem:[%s244 + $0x2c8] sm:$0xff]
        %v814 = vld [vmem:[%s244 + $0x2d0] sm:$0xff]
        %v815 = vld [vmem:[%s244 + $0x2d8] sm:$0xff]
        %v816 = vld [vmem:[%s244 + $0x2e0] sm:$0xff]
        %v817 = vld [vmem:[%s244 + $0x2e8] sm:$0xff]
        %v818 = vld [vmem:[%s244 + $0x2f0] sm:$0xff]
        %v819 = vld [vmem:[%s244 + $0x2f8] sm:$0xff]
        %v820 = vld [vmem:[%s244 + $0x300] sm:$0xff]
        %v821 = vld [vmem:[%s244 + $0x308] sm:$0xff]
        %v822 = vld [vmem:[%s244 + $0x310] sm:$0xff]
        %v823 = vld [vmem:[%s244 + $0x318] sm:$0xff]
        %v824 = vld [vmem:[%s244 + $0x320] sm:$0xff]
        %v825 = vld [vmem:[%s244 + $0x328] sm:$0xff]
        %v826 = vld [vmem:[%s244 + $0x330] sm:$0xff]
        %v827 = vld [vmem:[%s244 + $0x338] sm:$0xff]
        %v828 = vld [vmem:[%s244 + $0x340] sm:$0xff]
        %v829 = vld [vmem:[%s244 + $0x348] sm:$0xff]
        %v830 = vld [vmem:[%s244 + $0x350] sm:$0xff]
        %v831 = vld [vmem:[%s244 + $0x358] sm:$0xff]
        %v832 = vld [vmem:[%s244 + $0x360] sm:$0xff]
        %v833 = vld [vmem:[%s244 + $0x368] sm:$0xff]
        %v834 = vld [vmem:[%s244 + $0x370] sm:$0xff]
        %v835 = vld [vmem:[%s244 + $0x378] sm:$0xff]
        %v836 = vld [vmem:[%s244 + $0x380] sm:$0xff]
        %v837 = vld [vmem:[%s244 + $0x388] sm:$0xff]
        %v838 = vld [vmem:[%s244 + $0x390] sm:$0xff]
        %v839 = vld [vmem:[%s244 + $0x398] sm:$0xff]
        %v840 = vld [vmem:[%s244 + $0x3a0] sm:$0xff]
        %v841 = vld [vmem:[%s244 + $0x3a8] sm:$0xff]
        %v842 = vld [vmem:[%s244 + $0x3b0] sm:$0xff]
        %v843 = vld [vmem:[%s244 + $0x3b8] sm:$0xff]
        %v844 = vld [vmem:[%s244 + $0x3c0] sm:$0xff]
        %v845 = vld [vmem:[%s244 + $0x3c8] sm:$0xff]
        %v846 = vld [vmem:[%s244 + $0x3d0] sm:$0xff]
        %v847 = vld [vmem:[%s244 + $0x3d8] sm:$0xff]
        %v848 = vld [vmem:[%s244 + $0x3e0] sm:$0xff]
        %v849 = vld [vmem:[%s244 + $0x3e8] sm:$0xff]
        %v850 = vld [vmem:[%s244 + $0x3f0] sm:$0xff]
        %v851 = vld [vmem:[%s244 + $0x3f8] sm:$0xff]
        %v852 = vld [vmem:[%s244 + $0x400] sm:$0xff]
        %v853 = vld [vmem:[%s244 + $0x408] sm:$0xff]
        %v854 = vld [vmem:[%s244 + $0x410] sm:$0xff]
        %v855 = vld [vmem:[%s244 + $0x418] sm:$0xff]
        %v856 = vld [vmem:[%s244 + $0x420] sm:$0xff]
        %v857 = vld [vmem:[%s244 + $0x428] sm:$0xff]
        %v858 = vld [vmem:[%s244 + $0x430] sm:$0xff]
        %v859 = vld [vmem:[%s244 + $0x438] sm:$0xff]
        %v860 = vld [vmem:[%s244 + $0x440] sm:$0xff]
        %v861 = vld [vmem:[%s244 + $0x448] sm:$0xff]
        %v862 = vld [vmem:[%s244 + $0x450] sm:$0xff]
        %v863 = vld [vmem:[%s244 + $0x458] sm:$0xff]
        %v864 = vld [vmem:[%s244 + $0x460] sm:$0xff]
        %v865 = vld [vmem:[%s244 + $0x468] sm:$0xff]
        %v866 = vld [vmem:[%s244 + $0x470] sm:$0xff]
        %v867 = vld [vmem:[%s244 + $0x478] sm:$0xff]
        %v868 = vld [vmem:[%s244 + $0x480] sm:$0xff]
        %v869 = vld [vmem:[%s244 + $0x488] sm:$0xff]
        %v870 = vld [vmem:[%s244 + $0x490] sm:$0xff]
        %v871 = vld [vmem:[%s244 + $0x498] sm:$0xff]
        %v872 = vld [vmem:[%s244 + $0x4a0] sm:$0xff]
        %v873 = vld [vmem:[%s244 + $0x4a8] sm:$0xff]
        %v874 = vld [vmem:[%s244 + $0x4b0] sm:$0xff]
        %v875 = vld [vmem:[%s244 + $0x4b8] sm:$0xff]
        %v876 = vld [vmem:[%s244 + $0x4c0] sm:$0xff]
        %v877 = vld [vmem:[%s244 + $0x4c8] sm:$0xff]
        %v878 = vld [vmem:[%s244 + $0x4d0] sm:$0xff]
        %v879 = vld [vmem:[%s244 + $0x4d8] sm:$0xff]
        %v880 = vld [vmem:[%s244 + $0x4e0] sm:$0xff]
        %v881 = vld [vmem:[%s244 + $0x4e8] sm:$0xff]
        %v882 = vld [vmem:[%s244 + $0x4f0] sm:$0xff]
        %v883 = vld [vmem:[%s244 + $0x4f8] sm:$0xff]
        %v884 = vld [vmem:[%s244 + $0x500] sm:$0xff]
        %v885 = vld [vmem:[%s244 + $0x508] sm:$0xff]
        %v886 = vld [vmem:[%s244 + $0x510] sm:$0xff]
        %v887 = vld [vmem:[%s244 + $0x518] sm:$0xff]
        %v888 = vld [vmem:[%s244 + $0x520] sm:$0xff]
        %v889 = vld [vmem:[%s244 + $0x528] sm:$0xff]
        %v890 = vld [vmem:[%s244 + $0x530] sm:$0xff]
        %v891 = vld [vmem:[%s244 + $0x538] sm:$0xff]
        %v892 = vld [vmem:[%s244 + $0x540] sm:$0xff]
        %v893 = vld [vmem:[%s244 + $0x548] sm:$0xff]
        %v894 = vld [vmem:[%s244 + $0x550] sm:$0xff]
        %v895 = vld [vmem:[%s244 + $0x558] sm:$0xff]
        %v896 = vld [vmem:[%s244 + $0x560] sm:$0xff]
        %v897 = vld [vmem:[%s244 + $0x568] sm:$0xff]
        %v898 = vld [vmem:[%s244 + $0x570] sm:$0xff]
        %v899 = vld [vmem:[%s244 + $0x578] sm:$0xff]
        %v900 = vld [vmem:[%s244 + $0x580] sm:$0xff]
        %v901 = vld [vmem:[%s244 + $0x588] sm:$0xff]
        %v902 = vld [vmem:[%s244 + $0x590] sm:$0xff]
        %v903 = vld [vmem:[%s244 + $0x598] sm:$0xff]
        %v904 = vld [vmem:[%s244 + $0x5a0] sm:$0xff]
        %v905 = vld [vmem:[%s244 + $0x5a8] sm:$0xff]
        %v906 = vld [vmem:[%s244 + $0x5b0] sm:$0xff]
        %v907 = vld [vmem:[%s244 + $0x5b8] sm:$0xff]
        %v908 = vld [vmem:[%s244 + $0x5c0] sm:$0xff]
        %v909 = vld [vmem:[%s244 + $0x5c8] sm:$0xff]
        %v910 = vld [vmem:[%s244 + $0x5d0] sm:$0xff]
        %v911 = vld [vmem:[%s244 + $0x5d8] sm:$0xff]
        %v912 = vld [vmem:[%s244 + $0x5e0] sm:$0xff]
        %v913 = vld [vmem:[%s244 + $0x5e8] sm:$0xff]
        %v914 = vld [vmem:[%s244 + $0x5f0] sm:$0xff]
        %v915 = vld [vmem:[%s244 + $0x5f8] sm:$0xff]
        %v916 = vld [vmem:[%s244 + $0x600] sm:$0xff]
        %v917 = vld [vmem:[%s244 + $0x608] sm:$0xff]
        %v918 = vld [vmem:[%s244 + $0x610] sm:$0xff]
        %v919 = vld [vmem:[%s244 + $0x618] sm:$0xff]
        %v920 = vld [vmem:[%s244 + $0x620] sm:$0xff]
        %v921 = vld [vmem:[%s244 + $0x628] sm:$0xff]
        %v922 = vld [vmem:[%s244 + $0x630] sm:$0xff]
        %v923 = vld [vmem:[%s244 + $0x638] sm:$0xff]
        %v924 = vld [vmem:[%s244 + $0x640] sm:$0xff]
        %v925 = vld [vmem:[%s244 + $0x648] sm:$0xff]
        %v926 = vld [vmem:[%s244 + $0x650] sm:$0xff]
        %v927 = vld [vmem:[%s244 + $0x658] sm:$0xff]
        %v928 = vld [vmem:[%s244 + $0x660] sm:$0xff]
        %v929 = vld [vmem:[%s244 + $0x668] sm:$0xff]
        %v930 = vld [vmem:[%s244 + $0x670] sm:$0xff]
        %v931 = vld [vmem:[%s244 + $0x678] sm:$0xff]
        %v932 = vld [vmem:[%s244 + $0x680] sm:$0xff]
        %v933 = vld [vmem:[%s244 + $0x688] sm:$0xff]
        %v934 = vld [vmem:[%s244 + $0x690] sm:$0xff]
        %v935 = vld [vmem:[%s244 + $0x698] sm:$0xff]
        %v936 = vld [vmem:[%s244 + $0x6a0] sm:$0xff]
        %v937 = vld [vmem:[%s244 + $0x6a8] sm:$0xff]
        %v938 = vld [vmem:[%s244 + $0x6b0] sm:$0xff]
        %v939 = vld [vmem:[%s244 + $0x6b8] sm:$0xff]
        %v940 = vld [vmem:[%s244 + $0x6c0] sm:$0xff]
        %v941 = vld [vmem:[%s244 + $0x6c8] sm:$0xff]
        %v942 = vld [vmem:[%s244 + $0x6d0] sm:$0xff]
        %v943 = vld [vmem:[%s244 + $0x6d8] sm:$0xff]
        %v944 = vld [vmem:[%s244 + $0x6e0] sm:$0xff]
        %v945 = vld [vmem:[%s244 + $0x6e8] sm:$0xff]
        %v946 = vld [vmem:[%s244 + $0x6f0] sm:$0xff]
        %v947 = vld [vmem:[%s244 + $0x6f8] sm:$0xff]
        %v948 = vld [vmem:[%s244 + $0x700] sm:$0xff]
        %v949 = vld [vmem:[%s244 + $0x708] sm:$0xff]
        %v950 = vld [vmem:[%s244 + $0x710] sm:$0xff]
        %v951 = vld [vmem:[%s244 + $0x718] sm:$0xff]
        %v952 = vld [vmem:[%s244 + $0x720] sm:$0xff]
        %v953 = vld [vmem:[%s244 + $0x728] sm:$0xff]
        %v954 = vld [vmem:[%s244 + $0x730] sm:$0xff]
        %v955 = vld [vmem:[%s244 + $0x738] sm:$0xff]
        %v956 = vld [vmem:[%s244 + $0x740] sm:$0xff]
        %v957 = vld [vmem:[%s244 + $0x748] sm:$0xff]
        %v958 = vld [vmem:[%s244 + $0x750] sm:$0xff]
        %v959 = vld [vmem:[%s244 + $0x758] sm:$0xff]
        %v960 = vld [vmem:[%s244 + $0x760] sm:$0xff]
        %v961 = vld [vmem:[%s244 + $0x768] sm:$0xff]
        %v962 = vld [vmem:[%s244 + $0x770] sm:$0xff]
        %v963 = vld [vmem:[%s244 + $0x778] sm:$0xff]
        %v964 = vld [vmem:[%s244 + $0x780] sm:$0xff]
        %v965 = vld [vmem:[%s244 + $0x788] sm:$0xff]
        %v966 = vld [vmem:[%s244 + $0x790] sm:$0xff]
        %v967 = vld [vmem:[%s244 + $0x798] sm:$0xff]
        %v968 = vld [vmem:[%s244 + $0x7a0] sm:$0xff]
        %v969 = vld [vmem:[%s244 + $0x7a8] sm:$0xff]
        %v970 = vld [vmem:[%s244 + $0x7b0] sm:$0xff]
        %v971 = vld [vmem:[%s244 + $0x7b8] sm:$0xff]
        %v972 = vld [vmem:[%s244 + $0x7c0] sm:$0xff]
        %v973 = vld [vmem:[%s244 + $0x7c8] sm:$0xff]
        %v974 = vld [vmem:[%s244 + $0x7d0] sm:$0xff]
        %v975 = vld [vmem:[%s244 + $0x7d8] sm:$0xff]
        %v976 = vld [vmem:[%s244 + $0x7e0] sm:$0xff]
        %v977 = vld [vmem:[%s244 + $0x7e8] sm:$0xff]
        %v978 = vld [vmem:[%s244 + $0x7f0] sm:$0xff]
        %v979 = vld [vmem:[%s244 + $0x7f8] sm:$0xff]
        %v980 = vld [vmem:[%s244 + $0x800] sm:$0xff]
        %v981 = vld [vmem:[%s244 + $0x808] sm:$0xff]
        %v982 = vld [vmem:[%s244 + $0x810] sm:$0xff]
        %v983 = vld [vmem:[%s244 + $0x818] sm:$0xff]
        %v984 = vld [vmem:[%s244 + $0x820] sm:$0xff]
        %v985 = vld [vmem:[%s244 + $0x828] sm:$0xff]
        %v986 = vld [vmem:[%s244 + $0x830] sm:$0xff]
        %v987 = vld [vmem:[%s244 + $0x838] sm:$0xff]
        %v988 = vld [vmem:[%s244 + $0x840] sm:$0xff]
        %v989 = vld [vmem:[%s244 + $0x848] sm:$0xff]
        %v990 = vld [vmem:[%s244 + $0x850] sm:$0xff]
        %v991 = vld [vmem:[%s244 + $0x858] sm:$0xff]
        %v992 = vld [vmem:[%s244 + $0x860] sm:$0xff]
        %v993 = vld [vmem:[%s244 + $0x868] sm:$0xff]
        %v994 = vld [vmem:[%s244 + $0x870] sm:$0xff]
        %v995 = vld [vmem:[%s244 + $0x878] sm:$0xff]
        %v996 = vld [vmem:[%s244 + $0x880] sm:$0xff]
        %v997 = vld [vmem:[%s244 + $0x888] sm:$0xff]
        %v998 = vld [vmem:[%s244 + $0x890] sm:$0xff]
        %v999 = vld [vmem:[%s244 + $0x898] sm:$0xff]
        %v1000 = vld [vmem:[%s244 + $0x8a0] sm:$0xff]
        %v1001 = vld [vmem:[%s244 + $0x8a8] sm:$0xff]
        %v1002 = vld [vmem:[%s244 + $0x8b0] sm:$0xff]
        %v1003 = vld [vmem:[%s244 + $0x8b8] sm:$0xff]
        %v1004 = vld [vmem:[%s244 + $0x8c0] sm:$0xff]
        %v1005 = vld [vmem:[%s244 + $0x8c8] sm:$0xff]
        %v1006 = vld [vmem:[%s244 + $0x8d0] sm:$0xff]
        %v1007 = vld [vmem:[%s244 + $0x8d8] sm:$0xff]
        %v1008 = vld [vmem:[%s244 + $0x8e0] sm:$0xff]
        %v1009 = vld [vmem:[%s244 + $0x8e8] sm:$0xff]
        %v1010 = vld [vmem:[%s244 + $0x8f0] sm:$0xff]
        %v1011 = vld [vmem:[%s244 + $0x8f8] sm:$0xff]
        %v1012 = vld [vmem:[%s244 + $0x900] sm:$0xff]
        %v1013 = vld [vmem:[%s244 + $0x908] sm:$0xff]
        %v1014 = vld [vmem:[%s244 + $0x910] sm:$0xff]
        %v1015 = vld [vmem:[%s244 + $0x918] sm:$0xff]
        %v1016 = vld [vmem:[%s244 + $0x920] sm:$0xff]
        %v1017 = vld [vmem:[%s244 + $0x928] sm:$0xff]
        %v1018 = vld [vmem:[%s244 + $0x930] sm:$0xff]
        %v1019 = vld [vmem:[%s244 + $0x938] sm:$0xff]
        %v1020 = vld [vmem:[%s244 + $0x940] sm:$0xff]
        %v1021 = vld [vmem:[%s244 + $0x948] sm:$0xff]
        %v1022 = vld [vmem:[%s244 + $0x950] sm:$0xff]
        %v1023 = vld [vmem:[%s244 + $0x958] sm:$0xff]
        %v1024 = vld [vmem:[%s244 + $0x960] sm:$0xff]
        %v1025 = vld [vmem:[%s244 + $0x968] sm:$0xff]
        %v1026 = vld [vmem:[%s244 + $0x970] sm:$0xff]
        %v1027 = vld [vmem:[%s244 + $0x978] sm:$0xff]
        %v1028 = vld [vmem:[%s244 + $0x980] sm:$0xff]
        %v1029 = vld [vmem:[%s244 + $0x988] sm:$0xff]
        %v1030 = vld [vmem:[%s244 + $0x990] sm:$0xff]
        %v1031 = vld [vmem:[%s244 + $0x998] sm:$0xff]
        %v1032 = vld [vmem:[%s244 + $0x9a0] sm:$0xff]
        %v1033 = vld [vmem:[%s244 + $0x9a8] sm:$0xff]
        %v1034 = vld [vmem:[%s244 + $0x9b0] sm:$0xff]
        %v1035 = vld [vmem:[%s244 + $0x9b8] sm:$0xff]
        %v1036 = vld [vmem:[%s244 + $0x9c0] sm:$0xff]
        %v1037 = vld [vmem:[%s244 + $0x9c8] sm:$0xff]
        %v1038 = vld [vmem:[%s244 + $0x9d0] sm:$0xff]
        %v1039 = vld [vmem:[%s244 + $0x9d8] sm:$0xff]
        %v1040 = vld [vmem:[%s244 + $0x9e0] sm:$0xff]
        %v1041 = vld [vmem:[%s244 + $0x9e8] sm:$0xff]
        %v1042 = vld [vmem:[%s244 + $0x9f0] sm:$0xff]
        %v1043 = vld [vmem:[%s244 + $0x9f8] sm:$0xff]
        %v1044 = vld [vmem:[%s244 + $0xa00] sm:$0xff]
        %v1045 = vld [vmem:[%s244 + $0xa08] sm:$0xff]
        %v1046 = vld [vmem:[%s244 + $0xa10] sm:$0xff]
        %v1047 = vld [vmem:[%s244 + $0xa18] sm:$0xff]
        %v1048 = vld [vmem:[%s244 + $0xa20] sm:$0xff]
        %v1049 = vld [vmem:[%s244 + $0xa28] sm:$0xff]
        %v1050 = vld [vmem:[%s244 + $0xa30] sm:$0xff]
        %v1051 = vld [vmem:[%s244 + $0xa38] sm:$0xff]
        %v1052 = vld [vmem:[%s244 + $0xa40] sm:$0xff]
        %v1053 = vld [vmem:[%s244 + $0xa48] sm:$0xff]
        %v1054 = vld [vmem:[%s244 + $0xa50] sm:$0xff]
        %v1055 = vld [vmem:[%s244 + $0xa58] sm:$0xff]
        %v1056 = vld [vmem:[%s244 + $0xa60] sm:$0xff]
        %v1057 = vld [vmem:[%s244 + $0xa68] sm:$0xff]
        %v1058 = vld [vmem:[%s244 + $0xa70] sm:$0xff]
        %v1059 = vld [vmem:[%s244 + $0xa78] sm:$0xff]
        %v1060 = vld [vmem:[%s244 + $0xa80] sm:$0xff]
        %v1061 = vld [vmem:[%s244 + $0xa88] sm:$0xff]
        %v1062 = vld [vmem:[%s244 + $0xa90] sm:$0xff]
        %v1063 = vld [vmem:[%s244 + $0xa98] sm:$0xff]
        %v1064 = vld [vmem:[%s244 + $0xaa0] sm:$0xff]
        %v1065 = vld [vmem:[%s244 + $0xaa8] sm:$0xff]
        %v1066 = vld [vmem:[%s244 + $0xab0] sm:$0xff]
        %v1067 = vld [vmem:[%s244 + $0xab8] sm:$0xff]
        %v1068 = vld [vmem:[%s244 + $0xac0] sm:$0xff]
        %v1069 = vld [vmem:[%s244 + $0xac8] sm:$0xff]
        %v1070 = vld [vmem:[%s244 + $0xad0] sm:$0xff]
        %v1071 = vld [vmem:[%s244 + $0xad8] sm:$0xff]
        %v1072 = vld [vmem:[%s244 + $0xae0] sm:$0xff]
        %v1073 = vld [vmem:[%s244 + $0xae8] sm:$0xff]
        %v1074 = vld [vmem:[%s244 + $0xaf0] sm:$0xff]
        %v1075 = vld [vmem:[%s244 + $0xaf8] sm:$0xff]
        %v1076 = vld [vmem:[%s244 + $0xb00] sm:$0xff]
        %v1077 = vld [vmem:[%s244 + $0xb08] sm:$0xff]
        %v1078 = vld [vmem:[%s244 + $0xb10] sm:$0xff]
        %v1079 = vld [vmem:[%s244 + $0xb18] sm:$0xff]
        %v1080 = vld [vmem:[%s244 + $0xb20] sm:$0xff]
        %v1081 = vld [vmem:[%s244 + $0xb28] sm:$0xff]
        %v1082 = vld [vmem:[%s244 + $0xb30] sm:$0xff]
        %v1083 = vld [vmem:[%s244 + $0xb38] sm:$0xff]
        %v1084 = vld [vmem:[%s244 + $0xb40] sm:$0xff]
        %v1085 = vld [vmem:[%s244 + $0xb48] sm:$0xff]
        %v1086 = vld [vmem:[%s244 + $0xb50] sm:$0xff]
        %v1087 = vld [vmem:[%s244 + $0xb58] sm:$0xff]
        %v1088 = vld [vmem:[%s244 + $0xb60] sm:$0xff]
        %v1089 = vld [vmem:[%s244 + $0xb68] sm:$0xff]
        %v1090 = vld [vmem:[%s244 + $0xb70] sm:$0xff]
        %v1091 = vld [vmem:[%s244 + $0xb78] sm:$0xff]
        %v1092 = vld [vmem:[%s244 + $0xb80] sm:$0xff]
        %v1093 = vld [vmem:[%s244 + $0xb88] sm:$0xff]
        %v1094 = vld [vmem:[%s244 + $0xb90] sm:$0xff]
        %v1095 = vld [vmem:[%s244 + $0xb98] sm:$0xff]
        %v1096 = vld [vmem:[%s244 + $0xba0] sm:$0xff]
        %v1097 = vld [vmem:[%s244 + $0xba8] sm:$0xff]
        %v1098 = vld [vmem:[%s244 + $0xbb0] sm:$0xff]
        %v1099 = vld [vmem:[%s244 + $0xbb8] sm:$0xff]
        %v1100 = vld [vmem:[%s244 + $0xbc0] sm:$0xff]
        %v1101 = vld [vmem:[%s244 + $0xbc8] sm:$0xff]
        %v1102 = vld [vmem:[%s244 + $0xbd0] sm:$0xff]
        %v1103 = vld [vmem:[%s244 + $0xbd8] sm:$0xff]
        %v1104 = vld [vmem:[%s244 + $0xbe0] sm:$0xff]
        %v1105 = vld [vmem:[%s244 + $0xbe8] sm:$0xff]
        %v1106 = vld [vmem:[%s244 + $0xbf0] sm:$0xff]
        %v1107 = vld [vmem:[%s244 + $0xbf8] sm:$0xff]
        %v1108 = vld [vmem:[%s254] sm:$0xf]
        %v1110 = vperm.slane %v1108, 0
        %v1111 = vperm.slane %v1108, 1
        %v1112 = vperm.slane %v1108, 2
        %v1113 = vperm.slane %v1108, 3
        %vm1130 = vcmask 1041409
        %v1131 = vsel %vm1130, %v718, %v712
        %v1132 = vsel %vm1130, %v719, %v713
        %v1133 = vsel %vm1130, %v720, %v714
        %v1134 = vsel %vm1130, %v721, %v715
        %v1135 = vsel %vm1130, %v722, %v716
        %v1136 = vsel %vm1130, %v723, %v717
        %1143 = vmatpush.msra.mxu0 %v784
        %1144 = vmatpush.msra.mxu0 %v780
        %1145 = vmatpush.msra.mxu0 %v776
        %1146 = vmatpush.msra.mxu0 %v772
        %1147 = vmatpush.msra.mxu0 %v768
        %1148 = vmatpush.msra.mxu0 %v764
        %1149 = vmatpush.msra.mxu0 %v760
        %1150 = vmatpush.msra.mxu0 %v756
        %1151 = vmatpush.msra.mxu0 %v752
        %1152 = vmatpush.msra.mxu0 %v748
        %1153 = vmatpush.msra.mxu0 %v744
        %1154 = vmatpush.msra.mxu0 %v740
        %1155 = vmatpush.msra.mxu0 %v736
        %1156 = vmatpush.msra.mxu0 %v732
        %1157 = vmatpush.msra.mxu0 %v728
        %1158 = vmatpush.msra.mxu0 %v724
        %1159 = vmatmul.f32.gmra.mxu0 %v1131
        %v1160 = vpop.f32.mrf.mxu0
        %v1161 = vadd.f32 %v1110, %v1160
        %1162 = vdwg.mxu0
        %1163 = vmatpush.msra.mxu0 %v848
        %1164 = vmatpush.msra.mxu0 %v844
        %1165 = vmatpush.msra.mxu0 %v840
        %1166 = vmatpush.msra.mxu0 %v836
        %1167 = vmatpush.msra.mxu0 %v832
        %1168 = vmatpush.msra.mxu0 %v828
        %1169 = vmatpush.msra.mxu0 %v824
        %1170 = vmatpush.msra.mxu0 %v820
        %1171 = vmatpush.msra.mxu0 %v816
        %1172 = vmatpush.msra.mxu0 %v812
        %1173 = vmatpush.msra.mxu0 %v808
        %1174 = vmatpush.msra.mxu0 %v804
        %1175 = vmatpush.msra.mxu0 %v800
        %1176 = vmatpush.msra.mxu0 %v796
        %1177 = vmatpush.msra.mxu0 %v792
        %1178 = vmatpush.msra.mxu0 %v788
        %1179 = vmatmul.f32.gmra.mxu0 %v1132
        %v1180 = vpop.f32.mrf.mxu0
        %v1181 = vadd.f32 %v1161, %v1180
        %1182 = vdwg.mxu0
        %1183 = vmatpush.msra.mxu0 %v912
        %1184 = vmatpush.msra.mxu0 %v908
        %1185 = vmatpush.msra.mxu0 %v904
        %1186 = vmatpush.msra.mxu0 %v900
        %1187 = vmatpush.msra.mxu0 %v896
        %1188 = vmatpush.msra.mxu0 %v892
        %1189 = vmatpush.msra.mxu0 %v888
        %1190 = vmatpush.msra.mxu0 %v884
        %1191 = vmatpush.msra.mxu0 %v880
        %1192 = vmatpush.msra.mxu0 %v876
        %1193 = vmatpush.msra.mxu0 %v872
        %1194 = vmatpush.msra.mxu0 %v868
        %1195 = vmatpush.msra.mxu0 %v864
        %1196 = vmatpush.msra.mxu0 %v860
        %1197 = vmatpush.msra.mxu0 %v856
        %1198 = vmatpush.msra.mxu0 %v852
        %1199 = vmatmul.f32.gmra.mxu0 %v1133
        %v1200 = vpop.f32.mrf.mxu0
        %v1201 = vadd.f32 %v1181, %v1200
        %1202 = vdwg.mxu0
        %1203 = vmatpush.msra.mxu0 %v976
        %1204 = vmatpush.msra.mxu0 %v972
        %1205 = vmatpush.msra.mxu0 %v968
        %1206 = vmatpush.msra.mxu0 %v964
        %1207 = vmatpush.msra.mxu0 %v960
        %1208 = vmatpush.msra.mxu0 %v956
        %1209 = vmatpush.msra.mxu0 %v952
        %1210 = vmatpush.msra.mxu0 %v948
        %1211 = vmatpush.msra.mxu0 %v944
        %1212 = vmatpush.msra.mxu0 %v940
        %1213 = vmatpush.msra.mxu0 %v936
        %1214 = vmatpush.msra.mxu0 %v932
        %1215 = vmatpush.msra.mxu0 %v928
        %1216 = vmatpush.msra.mxu0 %v924
        %1217 = vmatpush.msra.mxu0 %v920
        %1218 = vmatpush.msra.mxu0 %v916
        %1219 = vmatmul.f32.gmra.mxu0 %v1134
        %v1220 = vpop.f32.mrf.mxu0
        %v1221 = vadd.f32 %v1201, %v1220
        %1222 = vdwg.mxu0
        %1223 = vmatpush.msra.mxu0 %v1040
        %1224 = vmatpush.msra.mxu0 %v1036
        %1225 = vmatpush.msra.mxu0 %v1032
        %1226 = vmatpush.msra.mxu0 %v1028
        %1227 = vmatpush.msra.mxu0 %v1024
        %1228 = vmatpush.msra.mxu0 %v1020
        %1229 = vmatpush.msra.mxu0 %v1016
        %1230 = vmatpush.msra.mxu0 %v1012
        %1231 = vmatpush.msra.mxu0 %v1008
        %1232 = vmatpush.msra.mxu0 %v1004
        %1233 = vmatpush.msra.mxu0 %v1000
        %1234 = vmatpush.msra.mxu0 %v996
        %1235 = vmatpush.msra.mxu0 %v992
        %1236 = vmatpush.msra.mxu0 %v988
        %1237 = vmatpush.msra.mxu0 %v984
        %1238 = vmatpush.msra.mxu0 %v980
        %1239 = vmatmul.f32.gmra.mxu0 %v1135
        %v1240 = vpop.f32.mrf.mxu0
        %v1241 = vadd.f32 %v1221, %v1240
        %1242 = vdwg.mxu0
        %1243 = vmatpush.msra.mxu0 %v1104
        %1244 = vmatpush.msra.mxu0 %v1100
        %1245 = vmatpush.msra.mxu0 %v1096
        %1246 = vmatpush.msra.mxu0 %v1092
        %1247 = vmatpush.msra.mxu0 %v1088
        %1248 = vmatpush.msra.mxu0 %v1084
        %1249 = vmatpush.msra.mxu0 %v1080
        %1250 = vmatpush.msra.mxu0 %v1076
        %1251 = vmatpush.msra.mxu0 %v1072
        %1252 = vmatpush.msra.mxu0 %v1068
        %1253 = vmatpush.msra.mxu0 %v1064
        %1254 = vmatpush.msra.mxu0 %v1060
        %1255 = vmatpush.msra.mxu0 %v1056
        %1256 = vmatpush.msra.mxu0 %v1052
        %1257 = vmatpush.msra.mxu0 %v1048
        %1258 = vmatpush.msra.mxu0 %v1044
        %1259 = vmatmul.f32.gmra.mxu0 %v1136
        %v1260 = vpop.f32.mrf.mxu0
        %v1261 = vadd.f32 %v1241, %v1260
        %1262 = vdwg.mxu0
        %1263 = vmatpush.msra.mxu0 %v785
        %1264 = vmatpush.msra.mxu0 %v781
        %1265 = vmatpush.msra.mxu0 %v777
        %1266 = vmatpush.msra.mxu0 %v773
        %1267 = vmatpush.msra.mxu0 %v769
        %1268 = vmatpush.msra.mxu0 %v765
        %1269 = vmatpush.msra.mxu0 %v761
        %1270 = vmatpush.msra.mxu0 %v757
        %1271 = vmatpush.msra.mxu0 %v753
        %1272 = vmatpush.msra.mxu0 %v749
        %1273 = vmatpush.msra.mxu0 %v745
        %1274 = vmatpush.msra.mxu0 %v741
        %1275 = vmatpush.msra.mxu0 %v737
        %1276 = vmatpush.msra.mxu0 %v733
        %1277 = vmatpush.msra.mxu0 %v729
        %1278 = vmatpush.msra.mxu0 %v725
        %1279 = vmatmul.f32.gmra.mxu0 %v1131
        %v1280 = vpop.f32.mrf.mxu0
        %v1281 = vadd.f32 %v1111, %v1280
        %1282 = vdwg.mxu0
        %1283 = vmatpush.msra.mxu0 %v849
        %1284 = vmatpush.msra.mxu0 %v845
        %1285 = vmatpush.msra.mxu0 %v841
        %1286 = vmatpush.msra.mxu0 %v837
        %1287 = vmatpush.msra.mxu0 %v833
        %1288 = vmatpush.msra.mxu0 %v829
        %1289 = vmatpush.msra.mxu0 %v825
        %1290 = vmatpush.msra.mxu0 %v821
        %1291 = vmatpush.msra.mxu0 %v817
        %1292 = vmatpush.msra.mxu0 %v813
        %1293 = vmatpush.msra.mxu0 %v809
        %1294 = vmatpush.msra.mxu0 %v805
        %1295 = vmatpush.msra.mxu0 %v801
        %1296 = vmatpush.msra.mxu0 %v797
        %1297 = vmatpush.msra.mxu0 %v793
        %1298 = vmatpush.msra.mxu0 %v789
        %1299 = vmatmul.f32.gmra.mxu0 %v1132
        %v1300 = vpop.f32.mrf.mxu0
        %v1301 = vadd.f32 %v1281, %v1300
        %1302 = vdwg.mxu0
        %1303 = vmatpush.msra.mxu0 %v913
        %1304 = vmatpush.msra.mxu0 %v909
        %1305 = vmatpush.msra.mxu0 %v905
        %1306 = vmatpush.msra.mxu0 %v901
        %1307 = vmatpush.msra.mxu0 %v897
        %1308 = vmatpush.msra.mxu0 %v893
        %1309 = vmatpush.msra.mxu0 %v889
        %1310 = vmatpush.msra.mxu0 %v885
        %1311 = vmatpush.msra.mxu0 %v881
        %1312 = vmatpush.msra.mxu0 %v877
        %1313 = vmatpush.msra.mxu0 %v873
        %1314 = vmatpush.msra.mxu0 %v869
        %1315 = vmatpush.msra.mxu0 %v865
        %1316 = vmatpush.msra.mxu0 %v861
        %1317 = vmatpush.msra.mxu0 %v857
        %1318 = vmatpush.msra.mxu0 %v853
        %1319 = vmatmul.f32.gmra.mxu0 %v1133
        %v1320 = vpop.f32.mrf.mxu0
        %v1321 = vadd.f32 %v1301, %v1320
        %1322 = vdwg.mxu0
        %1323 = vmatpush.msra.mxu0 %v977
        %1324 = vmatpush.msra.mxu0 %v973
        %1325 = vmatpush.msra.mxu0 %v969
        %1326 = vmatpush.msra.mxu0 %v965
        %1327 = vmatpush.msra.mxu0 %v961
        %1328 = vmatpush.msra.mxu0 %v957
        %1329 = vmatpush.msra.mxu0 %v953
        %1330 = vmatpush.msra.mxu0 %v949
        %1331 = vmatpush.msra.mxu0 %v945
        %1332 = vmatpush.msra.mxu0 %v941
        %1333 = vmatpush.msra.mxu0 %v937
        %1334 = vmatpush.msra.mxu0 %v933
        %1335 = vmatpush.msra.mxu0 %v929
        %1336 = vmatpush.msra.mxu0 %v925
        %1337 = vmatpush.msra.mxu0 %v921
        %1338 = vmatpush.msra.mxu0 %v917
        %1339 = vmatmul.f32.gmra.mxu0 %v1134
        %v1340 = vpop.f32.mrf.mxu0
        %v1341 = vadd.f32 %v1321, %v1340
        %1342 = vdwg.mxu0
        %1343 = vmatpush.msra.mxu0 %v1041
        %1344 = vmatpush.msra.mxu0 %v1037
        %1345 = vmatpush.msra.mxu0 %v1033
        %1346 = vmatpush.msra.mxu0 %v1029
        %1347 = vmatpush.msra.mxu0 %v1025
        %1348 = vmatpush.msra.mxu0 %v1021
        %1349 = vmatpush.msra.mxu0 %v1017
        %1350 = vmatpush.msra.mxu0 %v1013
        %1351 = vmatpush.msra.mxu0 %v1009
        %1352 = vmatpush.msra.mxu0 %v1005
        %1353 = vmatpush.msra.mxu0 %v1001
        %1354 = vmatpush.msra.mxu0 %v997
        %1355 = vmatpush.msra.mxu0 %v993
        %1356 = vmatpush.msra.mxu0 %v989
        %1357 = vmatpush.msra.mxu0 %v985
        %1358 = vmatpush.msra.mxu0 %v981
        %1359 = vmatmul.f32.gmra.mxu0 %v1135
        %v1360 = vpop.f32.mrf.mxu0
        %v1361 = vadd.f32 %v1341, %v1360
        %1362 = vdwg.mxu0
        %1363 = vmatpush.msra.mxu0 %v1105
        %1364 = vmatpush.msra.mxu0 %v1101
        %1365 = vmatpush.msra.mxu0 %v1097
        %1366 = vmatpush.msra.mxu0 %v1093
        %1367 = vmatpush.msra.mxu0 %v1089
        %1368 = vmatpush.msra.mxu0 %v1085
        %1369 = vmatpush.msra.mxu0 %v1081
        %1370 = vmatpush.msra.mxu0 %v1077
        %1371 = vmatpush.msra.mxu0 %v1073
        %1372 = vmatpush.msra.mxu0 %v1069
        %1373 = vmatpush.msra.mxu0 %v1065
        %1374 = vmatpush.msra.mxu0 %v1061
        %1375 = vmatpush.msra.mxu0 %v1057
        %1376 = vmatpush.msra.mxu0 %v1053
        %1377 = vmatpush.msra.mxu0 %v1049
        %1378 = vmatpush.msra.mxu0 %v1045
        %1379 = vmatmul.f32.gmra.mxu0 %v1136
        %v1380 = vpop.f32.mrf.mxu0
        %v1381 = vadd.f32 %v1361, %v1380
        %1382 = vdwg.mxu0
        %1383 = vmatpush.msra.mxu0 %v786
        %1384 = vmatpush.msra.mxu0 %v782
        %1385 = vmatpush.msra.mxu0 %v778
        %1386 = vmatpush.msra.mxu0 %v774
        %1387 = vmatpush.msra.mxu0 %v770
        %1388 = vmatpush.msra.mxu0 %v766
        %1389 = vmatpush.msra.mxu0 %v762
        %1390 = vmatpush.msra.mxu0 %v758
        %1391 = vmatpush.msra.mxu0 %v754
        %1392 = vmatpush.msra.mxu0 %v750
        %1393 = vmatpush.msra.mxu0 %v746
        %1394 = vmatpush.msra.mxu0 %v742
        %1395 = vmatpush.msra.mxu0 %v738
        %1396 = vmatpush.msra.mxu0 %v734
        %1397 = vmatpush.msra.mxu0 %v730
        %1398 = vmatpush.msra.mxu0 %v726
        %1399 = vmatmul.f32.gmra.mxu0 %v1131
        %v1400 = vpop.f32.mrf.mxu0
        %v1401 = vadd.f32 %v1112, %v1400
        %1402 = vdwg.mxu0
        %1403 = vmatpush.msra.mxu0 %v850
        %1404 = vmatpush.msra.mxu0 %v846
        %1405 = vmatpush.msra.mxu0 %v842
        %1406 = vmatpush.msra.mxu0 %v838
        %1407 = vmatpush.msra.mxu0 %v834
        %1408 = vmatpush.msra.mxu0 %v830
        %1409 = vmatpush.msra.mxu0 %v826
        %1410 = vmatpush.msra.mxu0 %v822
        %1411 = vmatpush.msra.mxu0 %v818
        %1412 = vmatpush.msra.mxu0 %v814
        %1413 = vmatpush.msra.mxu0 %v810
        %1414 = vmatpush.msra.mxu0 %v806
        %1415 = vmatpush.msra.mxu0 %v802
        %1416 = vmatpush.msra.mxu0 %v798
        %1417 = vmatpush.msra.mxu0 %v794
        %1418 = vmatpush.msra.mxu0 %v790
        %1419 = vmatmul.f32.gmra.mxu0 %v1132
        %v1420 = vpop.f32.mrf.mxu0
        %v1421 = vadd.f32 %v1401, %v1420
        %1422 = vdwg.mxu0
        %1423 = vmatpush.msra.mxu0 %v914
        %1424 = vmatpush.msra.mxu0 %v910
        %1425 = vmatpush.msra.mxu0 %v906
        %1426 = vmatpush.msra.mxu0 %v902
        %1427 = vmatpush.msra.mxu0 %v898
        %1428 = vmatpush.msra.mxu0 %v894
        %1429 = vmatpush.msra.mxu0 %v890
        %1430 = vmatpush.msra.mxu0 %v886
        %1431 = vmatpush.msra.mxu0 %v882
        %1432 = vmatpush.msra.mxu0 %v878
        %1433 = vmatpush.msra.mxu0 %v874
        %1434 = vmatpush.msra.mxu0 %v870
        %1435 = vmatpush.msra.mxu0 %v866
        %1436 = vmatpush.msra.mxu0 %v862
        %1437 = vmatpush.msra.mxu0 %v858
        %1438 = vmatpush.msra.mxu0 %v854
        %1439 = vmatmul.f32.gmra.mxu0 %v1133
        %v1440 = vpop.f32.mrf.mxu0
        %v1441 = vadd.f32 %v1421, %v1440
        %1442 = vdwg.mxu0
        %1443 = vmatpush.msra.mxu0 %v978
        %1444 = vmatpush.msra.mxu0 %v974
        %1445 = vmatpush.msra.mxu0 %v970
        %1446 = vmatpush.msra.mxu0 %v966
        %1447 = vmatpush.msra.mxu0 %v962
        %1448 = vmatpush.msra.mxu0 %v958
        %1449 = vmatpush.msra.mxu0 %v954
        %1450 = vmatpush.msra.mxu0 %v950
        %1451 = vmatpush.msra.mxu0 %v946
        %1452 = vmatpush.msra.mxu0 %v942
        %1453 = vmatpush.msra.mxu0 %v938
        %1454 = vmatpush.msra.mxu0 %v934
        %1455 = vmatpush.msra.mxu0 %v930
        %1456 = vmatpush.msra.mxu0 %v926
        %1457 = vmatpush.msra.mxu0 %v922
        %1458 = vmatpush.msra.mxu0 %v918
        %1459 = vmatmul.f32.gmra.mxu0 %v1134
        %v1460 = vpop.f32.mrf.mxu0
        %v1461 = vadd.f32 %v1441, %v1460
        %1462 = vdwg.mxu0
        %1463 = vmatpush.msra.mxu0 %v1042
        %1464 = vmatpush.msra.mxu0 %v1038
        %1465 = vmatpush.msra.mxu0 %v1034
        %1466 = vmatpush.msra.mxu0 %v1030
        %1467 = vmatpush.msra.mxu0 %v1026
        %1468 = vmatpush.msra.mxu0 %v1022
        %1469 = vmatpush.msra.mxu0 %v1018
        %1470 = vmatpush.msra.mxu0 %v1014
        %1471 = vmatpush.msra.mxu0 %v1010
        %1472 = vmatpush.msra.mxu0 %v1006
        %1473 = vmatpush.msra.mxu0 %v1002
        %1474 = vmatpush.msra.mxu0 %v998
        %1475 = vmatpush.msra.mxu0 %v994
        %1476 = vmatpush.msra.mxu0 %v990
        %1477 = vmatpush.msra.mxu0 %v986
        %1478 = vmatpush.msra.mxu0 %v982
        %1479 = vmatmul.f32.gmra.mxu0 %v1135
        %v1480 = vpop.f32.mrf.mxu0
        %v1481 = vadd.f32 %v1461, %v1480
        %1482 = vdwg.mxu0
        %1483 = vmatpush.msra.mxu0 %v1106
        %1484 = vmatpush.msra.mxu0 %v1102
        %1485 = vmatpush.msra.mxu0 %v1098
        %1486 = vmatpush.msra.mxu0 %v1094
        %1487 = vmatpush.msra.mxu0 %v1090
        %1488 = vmatpush.msra.mxu0 %v1086
        %1489 = vmatpush.msra.mxu0 %v1082
        %1490 = vmatpush.msra.mxu0 %v1078
        %1491 = vmatpush.msra.mxu0 %v1074
        %1492 = vmatpush.msra.mxu0 %v1070
        %1493 = vmatpush.msra.mxu0 %v1066
        %1494 = vmatpush.msra.mxu0 %v1062
        %1495 = vmatpush.msra.mxu0 %v1058
        %1496 = vmatpush.msra.mxu0 %v1054
        %1497 = vmatpush.msra.mxu0 %v1050
        %1498 = vmatpush.msra.mxu0 %v1046
        %1499 = vmatmul.f32.gmra.mxu0 %v1136
        %v1500 = vpop.f32.mrf.mxu0
        %v1501 = vadd.f32 %v1481, %v1500
        %1502 = vdwg.mxu0
        %1503 = vmatpush.msra.mxu0 %v787
        %1504 = vmatpush.msra.mxu0 %v783
        %1505 = vmatpush.msra.mxu0 %v779
        %1506 = vmatpush.msra.mxu0 %v775
        %1507 = vmatpush.msra.mxu0 %v771
        %1508 = vmatpush.msra.mxu0 %v767
        %1509 = vmatpush.msra.mxu0 %v763
        %1510 = vmatpush.msra.mxu0 %v759
        %1511 = vmatpush.msra.mxu0 %v755
        %1512 = vmatpush.msra.mxu0 %v751
        %1513 = vmatpush.msra.mxu0 %v747
        %1514 = vmatpush.msra.mxu0 %v743
        %1515 = vmatpush.msra.mxu0 %v739
        %1516 = vmatpush.msra.mxu0 %v735
        %1517 = vmatpush.msra.mxu0 %v731
        %1518 = vmatpush.msra.mxu0 %v727
        %1519 = vmatmul.f32.gmra.mxu0 %v1131
        %v1520 = vpop.f32.mrf.mxu0
        %v1521 = vadd.f32 %v1113, %v1520
        %1522 = vdwg.mxu0
        %1523 = vmatpush.msra.mxu0 %v851
        %1524 = vmatpush.msra.mxu0 %v847
        %1525 = vmatpush.msra.mxu0 %v843
        %1526 = vmatpush.msra.mxu0 %v839
        %1527 = vmatpush.msra.mxu0 %v835
        %1528 = vmatpush.msra.mxu0 %v831
        %1529 = vmatpush.msra.mxu0 %v827
        %1530 = vmatpush.msra.mxu0 %v823
        %1531 = vmatpush.msra.mxu0 %v819
        %1532 = vmatpush.msra.mxu0 %v815
        %1533 = vmatpush.msra.mxu0 %v811
        %1534 = vmatpush.msra.mxu0 %v807
        %1535 = vmatpush.msra.mxu0 %v803
        %1536 = vmatpush.msra.mxu0 %v799
        %1537 = vmatpush.msra.mxu0 %v795
        %1538 = vmatpush.msra.mxu0 %v791
        %1539 = vmatmul.f32.gmra.mxu0 %v1132
        %v1540 = vpop.f32.mrf.mxu0
        %v1541 = vadd.f32 %v1521, %v1540
        %1542 = vdwg.mxu0
        %1543 = vmatpush.msra.mxu0 %v915
        %1544 = vmatpush.msra.mxu0 %v911
        %1545 = vmatpush.msra.mxu0 %v907
        %1546 = vmatpush.msra.mxu0 %v903
        %1547 = vmatpush.msra.mxu0 %v899
        %1548 = vmatpush.msra.mxu0 %v895
        %1549 = vmatpush.msra.mxu0 %v891
        %1550 = vmatpush.msra.mxu0 %v887
        %1551 = vmatpush.msra.mxu0 %v883
        %1552 = vmatpush.msra.mxu0 %v879
        %1553 = vmatpush.msra.mxu0 %v875
        %1554 = vmatpush.msra.mxu0 %v871
        %1555 = vmatpush.msra.mxu0 %v867
        %1556 = vmatpush.msra.mxu0 %v863
        %1557 = vmatpush.msra.mxu0 %v859
        %1558 = vmatpush.msra.mxu0 %v855
        %1559 = vmatmul.f32.gmra.mxu0 %v1133
        %v1560 = vpop.f32.mrf.mxu0
        %v1561 = vadd.f32 %v1541, %v1560
        %1562 = vdwg.mxu0
        %1563 = vmatpush.msra.mxu0 %v979
        %1564 = vmatpush.msra.mxu0 %v975
        %1565 = vmatpush.msra.mxu0 %v971
        %1566 = vmatpush.msra.mxu0 %v967
        %1567 = vmatpush.msra.mxu0 %v963
        %1568 = vmatpush.msra.mxu0 %v959
        %1569 = vmatpush.msra.mxu0 %v955
        %1570 = vmatpush.msra.mxu0 %v951
        %1571 = vmatpush.msra.mxu0 %v947
        %1572 = vmatpush.msra.mxu0 %v943
        %1573 = vmatpush.msra.mxu0 %v939
        %1574 = vmatpush.msra.mxu0 %v935
        %1575 = vmatpush.msra.mxu0 %v931
        %1576 = vmatpush.msra.mxu0 %v927
        %1577 = vmatpush.msra.mxu0 %v923
        %1578 = vmatpush.msra.mxu0 %v919
        %1579 = vmatmul.f32.gmra.mxu0 %v1134
        %v1580 = vpop.f32.mrf.mxu0
        %v1581 = vadd.f32 %v1561, %v1580
        %1582 = vdwg.mxu0
        %1583 = vmatpush.msra.mxu0 %v1043
        %1584 = vmatpush.msra.mxu0 %v1039
        %1585 = vmatpush.msra.mxu0 %v1035
        %1586 = vmatpush.msra.mxu0 %v1031
        %1587 = vmatpush.msra.mxu0 %v1027
        %1588 = vmatpush.msra.mxu0 %v1023
        %1589 = vmatpush.msra.mxu0 %v1019
        %1590 = vmatpush.msra.mxu0 %v1015
        %1591 = vmatpush.msra.mxu0 %v1011
        %1592 = vmatpush.msra.mxu0 %v1007
        %1593 = vmatpush.msra.mxu0 %v1003
        %1594 = vmatpush.msra.mxu0 %v999
        %1595 = vmatpush.msra.mxu0 %v995
        %1596 = vmatpush.msra.mxu0 %v991
        %1597 = vmatpush.msra.mxu0 %v987
        %1598 = vmatpush.msra.mxu0 %v983
        %1599 = vmatmul.f32.gmra.mxu0 %v1135
        %v1600 = vpop.f32.mrf.mxu0
        %v1601 = vadd.f32 %v1581, %v1600
        %1602 = vdwg.mxu0
        %1603 = vmatpush.msra.mxu0 %v1107
        %1604 = vmatpush.msra.mxu0 %v1103
        %1605 = vmatpush.msra.mxu0 %v1099
        %1606 = vmatpush.msra.mxu0 %v1095
        %1607 = vmatpush.msra.mxu0 %v1091
        %1608 = vmatpush.msra.mxu0 %v1087
        %1609 = vmatpush.msra.mxu0 %v1083
        %1610 = vmatpush.msra.mxu0 %v1079
        %1611 = vmatpush.msra.mxu0 %v1075
        %1612 = vmatpush.msra.mxu0 %v1071
        %1613 = vmatpush.msra.mxu0 %v1067
        %1614 = vmatpush.msra.mxu0 %v1063
        %1615 = vmatpush.msra.mxu0 %v1059
        %1616 = vmatpush.msra.mxu0 %v1055
        %1617 = vmatpush.msra.mxu0 %v1051
        %1618 = vmatpush.msra.mxu0 %v1047
        %1619 = vmatmul.f32.gmra.mxu0 %v1136
        %v1620 = vpop.f32.mrf.mxu0
        %v1621 = vadd.f32 %v1601, %v1620
        %1622 = vdwg.mxu0
        %v1627 = vrot.slane %v1381, 6
        %v1628 = vrot.slane %v1501, 4
        %v1629 = vrot.slane %v1621, 2
        %vm1630 = vcmask 1041408
        %v1631 = vsel %vm1630, %v1261, %v1627
        %vm1632 = vcmask 1045508
        %v1633 = vsel %vm1632, %v1628, %v1629
        %vm1634 = vcmask 1043456
        %v1635 = vsel %vm1634, %v1631, %v1633
        %1637 = vst [vmem:[%s287] sm:$0xff] %v1635
        %s1638 = sand.u32 %s125, 1
        %s1639 = scalar_lea.sflag [#allocation4], %s1638
        %s1640 = sand.u32 %s125, 1
        %s1641 = smul.addr %s1640, 8
        %s1642 = scalar_lea.vmem [#allocation8], %s1641
        // Predicated region
        $region45: #{tpu_custom_call.1} parent=31 // pred_check
          %p1643 = pneg %p135
        $region46: #{tpu_custom_call.1} parent=31 // pred_check_branch
          %1645 = sbr.rel (%p1643) target = $region48
        $region47: #{tpu_custom_call.1} parent=31 // pred_region
          %1647 = vsyncadd %s1639, 0
          %s1648 = smul.addr %s28, 4
          %s1649 = smul.addr %s27, 4
          %s1650 = sadd.s32 %s1648, %s1649
          %s1651 = smul.addr %s1650, 2
          %s1652 = scalar_lea.hbm %s3, %s1651
          %s1654 = sshll.u32 %s1642, 4
          %s1655 = int_to_ptr.vmem [resolvable:$true] %s1654
          %s1656 = sshll.u32 %s1652, 4
          %s1657 = int_to_ptr.hbm [resolvable:$true] %s1656
          %1659 = dma.vmem_to_hbm [thread:$0]  %s1655, 128, %s1657, %s1639
        $region48: #{tpu_custom_call.1} parent=31 // pred_fallthru
          _
      $region32: #{tpu_custom_call.1} parent=5 // pred_fallthru
        _
      %p1660 = scmp.le.s32.totalorder 2, %s18
      // Predicated region
      $region49: #{tpu_custom_call.1} parent=5 // pred_check
        %p1661 = pneg %p1660
      $region50: #{tpu_custom_call.1} parent=5 // pred_check_branch
        %1663 = sbr.rel (%p1661) target = $region52
      $region51: #{tpu_custom_call.1} parent=5 // pred_region
        %s1664 = ssub.s32 %s18, 2
        // Predicated region
        $region53: #{tpu_custom_call.1} parent=51 // pred_check
          %p1665 = pneg %p141
        $region54: #{tpu_custom_call.1} parent=51 // pred_check_branch
          %1667 = sbr.rel (%p1665) target = $region56
        $region55: #{tpu_custom_call.1} parent=51 // pred_region
          %s1668 = sand.u32 %s126, 1
          %s1669 = scalar_lea.sflag [#allocation4], %s1668
          %s1670 = sand.u32 %s126, 1
          %s1671 = smul.addr %s1670, 8
          %s1672 = scalar_lea.vmem [#allocation8], %s1671
          %1674 = dma.done %s1669, 128
        $region56: #{tpu_custom_call.1} parent=51 // pred_fallthru
          _
      $region52: #{tpu_custom_call.1} parent=5 // pred_fallthru
        _
    $region6: #{tpu_custom_call.1} parent=1 // loop_footer
      %s22 = sadd.s32 1, %s18
    $region7: #{tpu_custom_call.1} parent=1 // loop_footer_branch
      %17 = sbr.rel target = $region3
    $region8: #{tpu_custom_call.1} parent=1 // loop_exit
      _
    %1675 = vsyncpa [#allocation3], 1
    %s1676 = scalar_lea.sflag [#allocation3], 1
    %1677 = vsyncpa %s1676, 1
    %1678 = vsyncpa [#allocation6], 1
    %s1679 = scalar_lea.sflag [#allocation6], 1
    %1680 = vsyncpa %s1679, 1
    %1681 = vsyncpa [#allocation4], 1
    %s1682 = scalar_lea.sflag [#allocation4], 1
    %1683 = vsyncpa %s1682, 1

</llo_original>
